<compile_context>
chip_gen: v7x
topology: tpu7x:2x2x1
jax: 0.10.0
libtpu: 0.0.40
codegen_flags: <defaults>
</compile_context>

<pallas_src>
import functools

import jax
import jax.numpy as jnp
from jax import lax
from jax.experimental import pallas as pl
from jax.experimental.pallas import tpu as pltpu


def _round_up(n, m):
    return ((n + m - 1) // m) * m


def _mlp_kernel(x_ref, w1_ref, b1_ref, w2_ref, b2_ref, w3_ref, b3_ref, o_ref):
    """One batch tile (tb rows of x; batch lives on the lane axis downstream).

    Shapes: x [tb, D] f32; w1 [H1, D]; b1 [H1, 1]; w2 [H2, H1]; b2 [H2, 1];
            w3 [H2, 1]; b3 [1] (SMEM scalar); o [1, tb].
    """
    # In-kernel cast (single f32 HBM read of x; no wrapper-side cast pass).
    xc = x_ref[...].astype(w1_ref.dtype)
    # Layer 1: NT contraction  w1 [H1, D] . x [tb, D]  ->  [H1, tb]
    # (feature-major, batch on lanes; no materialized transpose of x).
    h = lax.dot_general(w1_ref[...], xc, (((1,), (1,)), ((), ())),
                        preferred_element_type=jnp.float32)
    h = jnp.maximum(h + b1_ref[...], 0.0)          # bias + ReLU in f32 (v5e-safe)
    # Layer 2: [H2, H1] @ [H1, tb] -> [H2, tb].
    h = jnp.dot(w2_ref[...], h.astype(w2_ref.dtype),
                preferred_element_type=jnp.float32)
    h = jnp.maximum(h + b2_ref[...], 0.0)
    # Layer 3 (single output): VPU multiply + sublane reduce (keeps the N=1
    # matvec off the MXU); result is already lane-dense [1, tb].
    o = jnp.sum(h * w3_ref[...], axis=0, keepdims=True) + b3_ref[0]
    o_ref[...] = o.astype(o_ref.dtype)


@functools.partial(jax.jit, static_argnames=("tb", "min_steps", "use_bf16"))
def regression_head(x, w1, b1, w2, b2, w3, b3, *, tb=2048, min_steps=2,
                    use_bf16=True):
    """RegressionHead forward pass.

    Args:
      x : [B, D] float32 (consumed as-is: no wrapper transpose/pad/cast).
      w1: [H1, D],  b1: [H1]    (native PyTorch nn.Linear layouts)
      w2: [H2, H1], b2: [H2]
      w3: [1, H2],  b3: [1]
      tb: max batch tile. 2048 is VMEM-safe on v5e/v6e/v7x at the default
          hidden sizes; up to ~4096 is fine on v6e/v7x if desired.
      min_steps: minimum grid steps when B >= 256 (2 keeps both v7x
          TensorCores busy; near-free elsewhere).
      use_bf16: cast x/w1/w2 (and the inter-layer activation) to bf16 for the
          MXU; f32 accumulation and f32 bias/ReLU are kept. Set False for
          bit-faithful f32 numerics.

    Returns: [B, 1] float32.
    """
    B, D = x.shape
    H1 = w1.shape[0]
    H2 = w2.shape[0]

    # Balanced tiles, no batch padding. Either a single full-extent tile
    # (tb_eff == B, always (8,128)-legal) or 128-multiple tiles with a masked
    # trailing partial block.
    grid_n = pl.cdiv(B, tb)
    if B >= 256:
        grid_n = max(grid_n, min_steps)
    if grid_n <= 1:
        tb_eff = B
        grid_n = 1
    else:
        tb_eff = _round_up(pl.cdiv(B, grid_n), 128)
        grid_n = pl.cdiv(B, tb_eff)

    mxu_dtype = jnp.bfloat16 if use_bf16 else jnp.float32
    w1c = w1.astype(mxu_dtype)
    w2c = w2.astype(mxu_dtype)

    b1c = b1.reshape(H1, 1).astype(jnp.float32)
    b2c = b2.reshape(H2, 1).astype(jnp.float32)
    w3c = w3.reshape(H2, 1).astype(jnp.float32)   # column vector for lane-bcast
    b3c = b3.reshape(1).astype(jnp.float32)       # true scalar -> SMEM

    const = lambda shape: pl.BlockSpec(shape, lambda i: (0, 0))  # resident block

    flops = 2 * B * (D * H1 + H1 * H2 + H2)
    bytes_accessed = (B * D * 4                                   # x (f32 read)
                      + w1c.size * w1c.dtype.itemsize
                      + w2c.size * w2c.dtype.itemsize
                      + (H1 + H2 + H2 + 1) * 4                    # biases + w3
                      + B * 4)                                    # output
    cost = pl.CostEstimate(flops=flops, transcendentals=0,
                           bytes_accessed=bytes_accessed)

    out = pl.pallas_call(
        _mlp_kernel,
        out_shape=jax.ShapeDtypeStruct((1, B), jnp.float32),
        grid_spec=pltpu.PrefetchScalarGridSpec(
            num_scalar_prefetch=0,
            grid=(grid_n,),
            in_specs=[
                pl.BlockSpec((tb_eff, D), lambda i: (i, 0)),          # x tile
                const((H1, D)),                                       # W1
                const((H1, 1)),                                       # b1
                const((H2, H1)),                                      # W2
                const((H2, 1)),                                       # b2
                const((H2, 1)),                                       # W3^T
                pl.BlockSpec(memory_space=pltpu.MemorySpace.SMEM),    # b3 scalar
            ],
            out_specs=pl.BlockSpec((1, tb_eff), lambda i: (0, i)),    # lane-dense
        ),
        compiler_params=pltpu.CompilerParams(
            dimension_semantics=("parallel",),
            vmem_limit_bytes=32 * 1024 * 1024,   # legal on v5e/v6e/v7x
        ),
        cost_estimate=cost,
    )(x, w1c, b1c, w2c, b2c, w3c, b3c)

    # [1, B] -> [B, 1] (same flat order; no data shuffle of consequence).
    return out.reshape(B, 1)


def _mlp_reference(x, w1, b1, w2, b2, w3, b3, *, cast_dtype=None):
    """Pure-JAX reference matching the kernel's (optional) bf16 operand cast."""
    def c(a):
        if cast_dtype is None:
            return a
        return a.astype(cast_dtype).astype(jnp.float32)

    h = jnp.maximum(c(x) @ c(w1).T + b1[None, :], 0.0)
    h = jnp.maximum(c(h) @ c(w2).T + b2[None, :], 0.0)
    return h @ w3.T + b3[None, :]


def _xavier_uniform(key, fan_out, fan_in, dtype=jnp.float32):
    # nn.init.xavier_uniform_ on a [fan_out, fan_in] weight.
    bound = jnp.sqrt(6.0 / (fan_in + fan_out))
    return jax.random.uniform(key, (fan_out, fan_in), dtype, -bound, bound)


if __name__ == "__main__":
    # Small shapes consistent with the module defaults (hidden_dim=[512, 128]).
    D = 32
    H1, H2 = 512, 128

    key = jax.random.PRNGKey(0)
    kx, k1, k2, k3, kb1, kb2, kb3, kx2 = jax.random.split(key, 8)

    # Native PyTorch parameter layouts. The module inits biases to zero; small
    # nonzero biases are used so the bias path is actually exercised (forward
    # semantics are identical for any bias values).
    w1 = _xavier_uniform(k1, H1, D)
    w2 = _xavier_uniform(k2, H2, H1)
    w3 = _xavier_uniform(k3, 1, H2)
    b1 = 0.1 * jax.random.normal(kb1, (H1,), jnp.float32)
    b2 = 0.1 * jax.random.normal(kb2, (H2,), jnp.float32)
    b3 = 0.1 * jax.random.normal(kb3, (1,), jnp.float32)

    # --- small batch, exact f32 path (single grid step) ---
    B = 8
    x = jax.random.normal(kx, (B, D), dtype=jnp.float32)
    out = regression_head(x, w1, b1, w2, b2, w3, b3, use_bf16=False)
    out = jax.block_until_ready(out)
    ref = _mlp_reference(x, w1, b1, w2, b2, w3, b3)
    assert out.shape == (B, 1)
    assert jnp.allclose(out, ref, atol=1e-4, rtol=1e-4), float(
        jnp.max(jnp.abs(out - ref)))

    # --- ragged batch, default tiling (balanced >=2 steps, bf16 MXU) ---
    B2 = 264
    x2 = jax.random.normal(kx2, (B2, D), dtype=jnp.float32)
    ref2 = _mlp_reference(x2, w1, b1, w2, b2, w3, b3, cast_dtype=jnp.bfloat16)

    out2 = regression_head(x2, w1, b1, w2, b2, w3, b3, use_bf16=True)
    out2 = jax.block_until_ready(out2)
    assert out2.shape == (B2, 1)
    assert jnp.allclose(out2, ref2, atol=5e-3, rtol=5e-3), float(
        jnp.max(jnp.abs(out2 - ref2)))

    # --- same batch, forced small tile (multi-step grid + masked tail block) ---
    out3 = regression_head(x2, w1, b1, w2, b2, w3, b3, tb=128, use_bf16=True)
    out3 = jax.block_until_ready(out3)
    assert out3.shape == (B2, 1)
    assert jnp.allclose(out3, ref2, atol=5e-3, rtol=5e-3), float(
        jnp.max(jnp.abs(out3 - ref2)))

    print("KERNEL_OK")
</pallas_src>

<mosaic_0001>
module attributes {stable_mosaic.version = 11 : i64} {
  func.func @_mlp_kernel(%arg0: i32, %arg1: memref<8x32xf32, #tpu.memory_space<vmem>>, %arg2: memref<512x32xf32, #tpu.memory_space<vmem>>, %arg3: memref<512x1xf32, #tpu.memory_space<vmem>>, %arg4: memref<128x512xf32, #tpu.memory_space<vmem>>, %arg5: memref<128x1xf32, #tpu.memory_space<vmem>>, %arg6: memref<128x1xf32, #tpu.memory_space<vmem>>, %arg7: memref<1xf32, #tpu.memory_space<smem>>, %arg8: memref<1x8xf32, #tpu.memory_space<vmem>>) attributes {dimension_semantics = [#tpu.dimension_semantics<parallel>], iteration_bounds = array<i64: 1>, scalar_prefetch = 0 : i64, scratch_operands = 0 : i64, tpu.core_type = #tpu.core_type<tc>, window_params = [{transform_indices = @transform_0, window_bounds = array<i64: 8, 32>}, {pipeline_mode = #tpu.pipeline_mode<synchronous>, transform_indices = @transform_1, window_bounds = array<i64: 512, 32>}, {pipeline_mode = #tpu.pipeline_mode<synchronous>, transform_indices = @transform_2, window_bounds = array<i64: 512, 1>}, {pipeline_mode = #tpu.pipeline_mode<synchronous>, transform_indices = @transform_3, window_bounds = array<i64: 128, 512>}, {pipeline_mode = #tpu.pipeline_mode<synchronous>, transform_indices = @transform_4, window_bounds = array<i64: 128, 1>}, {pipeline_mode = #tpu.pipeline_mode<synchronous>, transform_indices = @transform_5, window_bounds = array<i64: 128, 1>}, {transform_indices = @transform_6, window_bounds = array<i64: 1>}, {transform_indices = @transform_7, window_bounds = array<i64: 1, 8>}]} {
    %c0 = arith.constant 0 : index
    %c0_0 = arith.constant 0 : index
    %0 = vector.load %arg1[%c0, %c0_0] : memref<8x32xf32, #tpu.memory_space<vmem>>, vector<8x32xf32>
    %c0_1 = arith.constant 0 : index
    %c0_2 = arith.constant 0 : index
    %1 = vector.load %arg2[%c0_1, %c0_2] : memref<512x32xf32, #tpu.memory_space<vmem>>, vector<512x32xf32>
    %cst = arith.constant dense<0.000000e+00> : vector<512x8xf32>
    %2 = tpu.matmul %1, %0, %cst {dimension_numbers = #tpu.dot_dimension_numbers<[1], [1], [0], [0], [0, 0, 1, 0], [], []>} : vector<512x32xf32>, vector<8x32xf32>, vector<512x8xf32> -> vector<512x8xf32>
    %c0_3 = arith.constant 0 : index
    %c0_4 = arith.constant 0 : index
    %3 = vector.load %arg3[%c0_3, %c0_4] : memref<512x1xf32, #tpu.memory_space<vmem>>, vector<512x1xf32>
    %4 = vector.broadcast %3 : vector<512x1xf32> to vector<512x8xf32>
    %5 = arith.addf %2, %4 : vector<512x8xf32>
    %cst_5 = arith.constant 0.000000e+00 : f32
    %6 = vector.broadcast %cst_5 : f32 to vector<512x8xf32>
    %7 = arith.maximumf %5, %6 : vector<512x8xf32>
    %c0_6 = arith.constant 0 : index
    %c0_7 = arith.constant 0 : index
    %8 = vector.load %arg4[%c0_6, %c0_7] : memref<128x512xf32, #tpu.memory_space<vmem>>, vector<128x512xf32>
    %cst_8 = arith.constant dense<0.000000e+00> : vector<128x8xf32>
    %9 = tpu.matmul %8, %7, %cst_8 {dimension_numbers = #tpu.dot_dimension_numbers<[1], [0], [0], [1], [0, 0, 1, 1], [], []>} : vector<128x512xf32>, vector<512x8xf32>, vector<128x8xf32> -> vector<128x8xf32>
    %c0_9 = arith.constant 0 : index
    %c0_10 = arith.constant 0 : index
    %10 = vector.load %arg5[%c0_9, %c0_10] : memref<128x1xf32, #tpu.memory_space<vmem>>, vector<128x1xf32>
    %11 = vector.broadcast %10 : vector<128x1xf32> to vector<128x8xf32>
    %12 = arith.addf %9, %11 : vector<128x8xf32>
    %cst_11 = arith.constant 0.000000e+00 : f32
    %13 = vector.broadcast %cst_11 : f32 to vector<128x8xf32>
    %14 = arith.maximumf %12, %13 : vector<128x8xf32>
    %c0_12 = arith.constant 0 : index
    %c0_13 = arith.constant 0 : index
    %15 = vector.load %arg6[%c0_12, %c0_13] : memref<128x1xf32, #tpu.memory_space<vmem>>, vector<128x1xf32>
    %16 = vector.broadcast %15 : vector<128x1xf32> to vector<128x8xf32>
    %17 = arith.mulf %14, %16 : vector<128x8xf32>
    %cst_14 = arith.constant dense<0.000000e+00> : vector<8xf32>
    %18 = vector.multi_reduction <add>, %17, %cst_14 [0] : vector<128x8xf32> to vector<8xf32>
    %19 = vector.shape_cast %18 : vector<8xf32> to vector<1x8xf32>
    %c0_15 = arith.constant 0 : index
    %20 = memref.load %arg7[%c0_15] : memref<1xf32, #tpu.memory_space<smem>>
    %21 = vector.broadcast %20 : f32 to vector<1x8xf32>
    %22 = arith.addf %19, %21 : vector<1x8xf32>
    %c0_16 = arith.constant 0 : index
    %c0_17 = arith.constant 0 : index
    %23 = vector.load %arg8[%c0_16, %c0_17] : memref<1x8xf32, #tpu.memory_space<vmem>>, vector<1x8xf32>
    tpu.vector_store %arg8[%c0_16, %c0_17], %22 {strides = array<i32>} : memref<1x8xf32, #tpu.memory_space<vmem>>, vector<1x8xf32>,
    return
  }
  func.func @transform_0(%arg0: i32) -> (i32, i32) {
    %c0_i32 = arith.constant 0 : i32
    %c0_i32_0 = arith.constant 0 : i32
    return %arg0, %c0_i32 : i32, i32
  }
  func.func @transform_1(%arg0: i32) -> (i32, i32) {
    %c0_i32 = arith.constant 0 : i32
    %c0_i32_0 = arith.constant 0 : i32
    %c0_i32_1 = arith.constant 0 : i32
    return %c0_i32, %c0_i32_0 : i32, i32
  }
  func.func @transform_2(%arg0: i32) -> (i32, i32) {
    %c0_i32 = arith.constant 0 : i32
    %c0_i32_0 = arith.constant 0 : i32
    %c0_i32_1 = arith.constant 0 : i32
    return %c0_i32, %c0_i32_0 : i32, i32
  }
  func.func @transform_3(%arg0: i32) -> (i32, i32) {
    %c0_i32 = arith.constant 0 : i32
    %c0_i32_0 = arith.constant 0 : i32
    %c0_i32_1 = arith.constant 0 : i32
    return %c0_i32, %c0_i32_0 : i32, i32
  }
  func.func @transform_4(%arg0: i32) -> (i32, i32) {
    %c0_i32 = arith.constant 0 : i32
    %c0_i32_0 = arith.constant 0 : i32
    %c0_i32_1 = arith.constant 0 : i32
    return %c0_i32, %c0_i32_0 : i32, i32
  }
  func.func @transform_5(%arg0: i32) -> (i32, i32) {
    %c0_i32 = arith.constant 0 : i32
    %c0_i32_0 = arith.constant 0 : i32
    %c0_i32_1 = arith.constant 0 : i32
    return %c0_i32, %c0_i32_0 : i32, i32
  }
  func.func @transform_6(%arg0: i32) -> i32 {
    %c0_i32 = arith.constant 0 : i32
    %c0_i32_0 = arith.constant 0 : i32
    return %c0_i32 : i32
  }
  func.func @transform_7(%arg0: i32) -> (i32, i32) {
    %c0_i32 = arith.constant 0 : i32
    %c0_i32_0 = arith.constant 0 : i32
    return %c0_i32, %arg0 : i32, i32
  }
}

</mosaic_0001>

<llo_original>
// kernel: regression_head.1
$region0: #{regression_head.1}
  #allocation0 [shape = 'u32[]', space=smem, size = 0x4, offset = 0x4, fixed_abs, tag = 'smem constant byte address 0x4 - core index']
  #allocation1 [shape = 'u32[144,128]{1,0:T(1,128)}', space=vmem, size = 0x12000, scoped, tag = 'internal scratch']
  #allocation2 [shape = 'f32[1]{0:T(128)S(6)}', space=smem, size = 0x200, scoped, tag = 'scoped memory for regression_head.1']
  %s0 = inlined_call_operand.vmem [shape: f32[8,32], index: 0, kind: input, shape index: {}]
  %s1 = inlined_call_operand.vmem [shape: f32[512,32], index: 1, kind: input, shape index: {}]
  %s2 = inlined_call_operand.vmem [shape: f32[512,1], index: 2, kind: input, shape index: {}]
  %s3 = inlined_call_operand.vmem [shape: f32[128,512], index: 3, kind: input, shape index: {}]
  %s4 = inlined_call_operand.vmem [shape: f32[128,1], index: 4, kind: input, shape index: {}]
  %s5 = inlined_call_operand.vmem [shape: f32[128,1], index: 5, kind: input, shape index: {}]
  %s6 = inlined_call_operand.<no memory space> [shape: f32[1], index: 6, kind: input, shape index: {}]
  %s7 = inlined_call_operand.hbm [shape: f32[1,8], index: 7, kind: output, shape index: {}]
  %s8 = sld [smem:[#allocation0]]
  $region38: #{regression_head.1} parent=0
    _
  %s10 = ssub.s32 1, %s8
  %s11 = scalar_select 0, %s10, %s8
  %12 = sst [smem:[#allocation2]] %s6
  $region1: #{regression_head.1} parent=0
    #allocation3 [shape = 'u8[512]{0}', space=vmem, size = 0x400, scoped, tag = 'output window, operand 0, single buffered']
    #allocation4 [shape = 's32[1]{0}', space=sflag, size = 0x4, scoped, tag = 'scoped memory for regression_head.1']
    %13 = vsyncpa [#allocation4], 0
    // Predicated region
    $region2: #{regression_head.1} parent=1 // pred_check
      _
    $region3: #{regression_head.1} parent=1 // pred_check_branch
      %15 = sbr.rel (0) target = $region5
    $region4: #{regression_head.1} parent=1 // pred_region
      _
    $region5: #{regression_head.1} parent=1 // pred_fallthru
      _
    // Predicated region
    $region6: #{regression_head.1} parent=1 // pred_check
      _
    $region7: #{regression_head.1} parent=1 // pred_check_branch
      %17 = sbr.rel (0) target = $region9
    $region8: #{regression_head.1} parent=1 // pred_region
      _
    $region9: #{regression_head.1} parent=1 // pred_fallthru
      _
    // Predicated region
    $region10: #{regression_head.1} parent=1 // pred_check
      _
    $region11: #{regression_head.1} parent=1 // pred_check_branch
      %19 = sbr.rel (0) target = $region13
    $region12: #{regression_head.1} parent=1 // pred_region
      _
    $region13: #{regression_head.1} parent=1 // pred_fallthru
      _
    // Predicated region
    $region14: #{regression_head.1} parent=1 // pred_check
      _
    $region15: #{regression_head.1} parent=1 // pred_check_branch
      %21 = sbr.rel (0) target = $region17
    $region16: #{regression_head.1} parent=1 // pred_region
      _
    $region17: #{regression_head.1} parent=1 // pred_fallthru
      _
    // Predicated region
    $region18: #{regression_head.1} parent=1 // pred_check
      _
    $region19: #{regression_head.1} parent=1 // pred_check_branch
      %23 = sbr.rel (0) target = $region21
    $region20: #{regression_head.1} parent=1 // pred_region
      _
    $region21: #{regression_head.1} parent=1 // pred_fallthru
      _
    // Predicated region
    $region22: #{regression_head.1} parent=1 // pred_check
      _
    $region23: #{regression_head.1} parent=1 // pred_check_branch
      %25 = sbr.rel (0) target = $region25
    $region24: #{regression_head.1} parent=1 // pred_region
      _
    $region25: #{regression_head.1} parent=1 // pred_fallthru
      _
    // Predicated region
    $region26: #{regression_head.1} parent=1 // pred_check
      _
    $region27: #{regression_head.1} parent=1 // pred_check_branch
      %27 = sbr.rel (0) target = $region29
    $region28: #{regression_head.1} parent=1 // pred_region
      _
    $region29: #{regression_head.1} parent=1 // pred_fallthru
      _
    %v28 = vld [vmem:[%s0] sm:$0xff]
    %v29 = vld [vmem:[%s1] sm:$0xff]
    %v30 = vld [vmem:[%s1 + $0x8] sm:$0xff]
    %v31 = vld [vmem:[%s1 + $0x10] sm:$0xff]
    %v32 = vld [vmem:[%s1 + $0x18] sm:$0xff]
    %v33 = vld [vmem:[%s1 + $0x20] sm:$0xff]
    %v34 = vld [vmem:[%s1 + $0x28] sm:$0xff]
    %v35 = vld [vmem:[%s1 + $0x30] sm:$0xff]
    %v36 = vld [vmem:[%s1 + $0x38] sm:$0xff]
    %v37 = vld [vmem:[%s1 + $0x40] sm:$0xff]
    %v38 = vld [vmem:[%s1 + $0x48] sm:$0xff]
    %v39 = vld [vmem:[%s1 + $0x50] sm:$0xff]
    %v40 = vld [vmem:[%s1 + $0x58] sm:$0xff]
    %v41 = vld [vmem:[%s1 + $0x60] sm:$0xff]
    %v42 = vld [vmem:[%s1 + $0x68] sm:$0xff]
    %v43 = vld [vmem:[%s1 + $0x70] sm:$0xff]
    %v44 = vld [vmem:[%s1 + $0x78] sm:$0xff]
    %v45 = vld [vmem:[%s1 + $0x80] sm:$0xff]
    %v46 = vld [vmem:[%s1 + $0x88] sm:$0xff]
    %v47 = vld [vmem:[%s1 + $0x90] sm:$0xff]
    %v48 = vld [vmem:[%s1 + $0x98] sm:$0xff]
    %v49 = vld [vmem:[%s1 + $0xa0] sm:$0xff]
    %v50 = vld [vmem:[%s1 + $0xa8] sm:$0xff]
    %v51 = vld [vmem:[%s1 + $0xb0] sm:$0xff]
    %v52 = vld [vmem:[%s1 + $0xb8] sm:$0xff]
    %v53 = vld [vmem:[%s1 + $0xc0] sm:$0xff]
    %v54 = vld [vmem:[%s1 + $0xc8] sm:$0xff]
    %v55 = vld [vmem:[%s1 + $0xd0] sm:$0xff]
    %v56 = vld [vmem:[%s1 + $0xd8] sm:$0xff]
    %v57 = vld [vmem:[%s1 + $0xe0] sm:$0xff]
    %v58 = vld [vmem:[%s1 + $0xe8] sm:$0xff]
    %v59 = vld [vmem:[%s1 + $0xf0] sm:$0xff]
    %v60 = vld [vmem:[%s1 + $0xf8] sm:$0xff]
    %v61 = vld [vmem:[%s1 + $0x100] sm:$0xff]
    %v62 = vld [vmem:[%s1 + $0x108] sm:$0xff]
    %v63 = vld [vmem:[%s1 + $0x110] sm:$0xff]
    %v64 = vld [vmem:[%s1 + $0x118] sm:$0xff]
    %v65 = vld [vmem:[%s1 + $0x120] sm:$0xff]
    %v66 = vld [vmem:[%s1 + $0x128] sm:$0xff]
    %v67 = vld [vmem:[%s1 + $0x130] sm:$0xff]
    %v68 = vld [vmem:[%s1 + $0x138] sm:$0xff]
    %v69 = vld [vmem:[%s1 + $0x140] sm:$0xff]
    %v70 = vld [vmem:[%s1 + $0x148] sm:$0xff]
    %v71 = vld [vmem:[%s1 + $0x150] sm:$0xff]
    %v72 = vld [vmem:[%s1 + $0x158] sm:$0xff]
    %v73 = vld [vmem:[%s1 + $0x160] sm:$0xff]
    %v74 = vld [vmem:[%s1 + $0x168] sm:$0xff]
    %v75 = vld [vmem:[%s1 + $0x170] sm:$0xff]
    %v76 = vld [vmem:[%s1 + $0x178] sm:$0xff]
    %v77 = vld [vmem:[%s1 + $0x180] sm:$0xff]
    %v78 = vld [vmem:[%s1 + $0x188] sm:$0xff]
    %v79 = vld [vmem:[%s1 + $0x190] sm:$0xff]
    %v80 = vld [vmem:[%s1 + $0x198] sm:$0xff]
    %v81 = vld [vmem:[%s1 + $0x1a0] sm:$0xff]
    %v82 = vld [vmem:[%s1 + $0x1a8] sm:$0xff]
    %v83 = vld [vmem:[%s1 + $0x1b0] sm:$0xff]
    %v84 = vld [vmem:[%s1 + $0x1b8] sm:$0xff]
    %v85 = vld [vmem:[%s1 + $0x1c0] sm:$0xff]
    %v86 = vld [vmem:[%s1 + $0x1c8] sm:$0xff]
    %v87 = vld [vmem:[%s1 + $0x1d0] sm:$0xff]
    %v88 = vld [vmem:[%s1 + $0x1d8] sm:$0xff]
    %v89 = vld [vmem:[%s1 + $0x1e0] sm:$0xff]
    %v90 = vld [vmem:[%s1 + $0x1e8] sm:$0xff]
    %v91 = vld [vmem:[%s1 + $0x1f0] sm:$0xff]
    %v92 = vld [vmem:[%s1 + $0x1f8] sm:$0xff]
    %v93 = vld [vmem:[%s2] sm:$0xff]
    %v94 = vld [vmem:[%s2 + $0x8] sm:$0xff]
    %v95 = vld [vmem:[%s2 + $0x10] sm:$0xff]
    %v96 = vld [vmem:[%s2 + $0x18] sm:$0xff]
    %v97 = vld [vmem:[%s2 + $0x20] sm:$0xff]
    %v98 = vld [vmem:[%s2 + $0x28] sm:$0xff]
    %v99 = vld [vmem:[%s2 + $0x30] sm:$0xff]
    %v100 = vld [vmem:[%s2 + $0x38] sm:$0xff]
    %v101 = vld [vmem:[%s2 + $0x40] sm:$0xff]
    %v102 = vld [vmem:[%s2 + $0x48] sm:$0xff]
    %v103 = vld [vmem:[%s2 + $0x50] sm:$0xff]
    %v104 = vld [vmem:[%s2 + $0x58] sm:$0xff]
    %v105 = vld [vmem:[%s2 + $0x60] sm:$0xff]
    %v106 = vld [vmem:[%s2 + $0x68] sm:$0xff]
    %v107 = vld [vmem:[%s2 + $0x70] sm:$0xff]
    %v108 = vld [vmem:[%s2 + $0x78] sm:$0xff]
    %v109 = vld [vmem:[%s2 + $0x80] sm:$0xff]
    %v110 = vld [vmem:[%s2 + $0x88] sm:$0xff]
    %v111 = vld [vmem:[%s2 + $0x90] sm:$0xff]
    %v112 = vld [vmem:[%s2 + $0x98] sm:$0xff]
    %v113 = vld [vmem:[%s2 + $0xa0] sm:$0xff]
    %v114 = vld [vmem:[%s2 + $0xa8] sm:$0xff]
    %v115 = vld [vmem:[%s2 + $0xb0] sm:$0xff]
    %v116 = vld [vmem:[%s2 + $0xb8] sm:$0xff]
    %v117 = vld [vmem:[%s2 + $0xc0] sm:$0xff]
    %v118 = vld [vmem:[%s2 + $0xc8] sm:$0xff]
    %v119 = vld [vmem:[%s2 + $0xd0] sm:$0xff]
    %v120 = vld [vmem:[%s2 + $0xd8] sm:$0xff]
    %v121 = vld [vmem:[%s2 + $0xe0] sm:$0xff]
    %v122 = vld [vmem:[%s2 + $0xe8] sm:$0xff]
    %v123 = vld [vmem:[%s2 + $0xf0] sm:$0xff]
    %v124 = vld [vmem:[%s2 + $0xf8] sm:$0xff]
    %v125 = vld [vmem:[%s2 + $0x100] sm:$0xff]
    %v126 = vld [vmem:[%s2 + $0x108] sm:$0xff]
    %v127 = vld [vmem:[%s2 + $0x110] sm:$0xff]
    %v128 = vld [vmem:[%s2 + $0x118] sm:$0xff]
    %v129 = vld [vmem:[%s2 + $0x120] sm:$0xff]
    %v130 = vld [vmem:[%s2 + $0x128] sm:$0xff]
    %v131 = vld [vmem:[%s2 + $0x130] sm:$0xff]
    %v132 = vld [vmem:[%s2 + $0x138] sm:$0xff]
    %v133 = vld [vmem:[%s2 + $0x140] sm:$0xff]
    %v134 = vld [vmem:[%s2 + $0x148] sm:$0xff]
    %v135 = vld [vmem:[%s2 + $0x150] sm:$0xff]
    %v136 = vld [vmem:[%s2 + $0x158] sm:$0xff]
    %v137 = vld [vmem:[%s2 + $0x160] sm:$0xff]
    %v138 = vld [vmem:[%s2 + $0x168] sm:$0xff]
    %v139 = vld [vmem:[%s2 + $0x170] sm:$0xff]
    %v140 = vld [vmem:[%s2 + $0x178] sm:$0xff]
    %v141 = vld [vmem:[%s2 + $0x180] sm:$0xff]
    %v142 = vld [vmem:[%s2 + $0x188] sm:$0xff]
    %v143 = vld [vmem:[%s2 + $0x190] sm:$0xff]
    %v144 = vld [vmem:[%s2 + $0x198] sm:$0xff]
    %v145 = vld [vmem:[%s2 + $0x1a0] sm:$0xff]
    %v146 = vld [vmem:[%s2 + $0x1a8] sm:$0xff]
    %v147 = vld [vmem:[%s2 + $0x1b0] sm:$0xff]
    %v148 = vld [vmem:[%s2 + $0x1b8] sm:$0xff]
    %v149 = vld [vmem:[%s2 + $0x1c0] sm:$0xff]
    %v150 = vld [vmem:[%s2 + $0x1c8] sm:$0xff]
    %v151 = vld [vmem:[%s2 + $0x1d0] sm:$0xff]
    %v152 = vld [vmem:[%s2 + $0x1d8] sm:$0xff]
    %v153 = vld [vmem:[%s2 + $0x1e0] sm:$0xff]
    %v154 = vld [vmem:[%s2 + $0x1e8] sm:$0xff]
    %v155 = vld [vmem:[%s2 + $0x1f0] sm:$0xff]
    %v156 = vld [vmem:[%s2 + $0x1f8] sm:$0xff]
    %158 = vset.pattern.permute.xlu0 0
    %159 = vperm.xlu0 %158, %v93
    %v160 = vpop.permute.xlu0 %159
    %163 = vset.pattern.permute.xlu0 0
    %164 = vperm.xlu0 %163, %v94
    %v165 = vpop.permute.xlu0 %164
    %168 = vset.pattern.permute.xlu0 0
    %169 = vperm.xlu0 %168, %v95
    %v170 = vpop.permute.xlu0 %169
    %173 = vset.pattern.permute.xlu0 0
    %174 = vperm.xlu0 %173, %v96
    %v175 = vpop.permute.xlu0 %174
    %178 = vset.pattern.permute.xlu0 0
    %179 = vperm.xlu0 %178, %v97
    %v180 = vpop.permute.xlu0 %179
    %183 = vset.pattern.permute.xlu0 0
    %184 = vperm.xlu0 %183, %v98
    %v185 = vpop.permute.xlu0 %184
    %188 = vset.pattern.permute.xlu0 0
    %189 = vperm.xlu0 %188, %v99
    %v190 = vpop.permute.xlu0 %189
    %193 = vset.pattern.permute.xlu0 0
    %194 = vperm.xlu0 %193, %v100
    %v195 = vpop.permute.xlu0 %194
    %198 = vset.pattern.permute.xlu0 0
    %199 = vperm.xlu0 %198, %v101
    %v200 = vpop.permute.xlu0 %199
    %203 = vset.pattern.permute.xlu0 0
    %204 = vperm.xlu0 %203, %v102
    %v205 = vpop.permute.xlu0 %204
    %208 = vset.pattern.permute.xlu0 0
    %209 = vperm.xlu0 %208, %v103
    %v210 = vpop.permute.xlu0 %209
    %213 = vset.pattern.permute.xlu0 0
    %214 = vperm.xlu0 %213, %v104
    %v215 = vpop.permute.xlu0 %214
    %218 = vset.pattern.permute.xlu0 0
    %219 = vperm.xlu0 %218, %v105
    %v220 = vpop.permute.xlu0 %219
    %223 = vset.pattern.permute.xlu0 0
    %224 = vperm.xlu0 %223, %v106
    %v225 = vpop.permute.xlu0 %224
    %228 = vset.pattern.permute.xlu0 0
    %229 = vperm.xlu0 %228, %v107
    %v230 = vpop.permute.xlu0 %229
    %233 = vset.pattern.permute.xlu0 0
    %234 = vperm.xlu0 %233, %v108
    %v235 = vpop.permute.xlu0 %234
    %238 = vset.pattern.permute.xlu0 0
    %239 = vperm.xlu0 %238, %v109
    %v240 = vpop.permute.xlu0 %239
    %243 = vset.pattern.permute.xlu0 0
    %244 = vperm.xlu0 %243, %v110
    %v245 = vpop.permute.xlu0 %244
    %248 = vset.pattern.permute.xlu0 0
    %249 = vperm.xlu0 %248, %v111
    %v250 = vpop.permute.xlu0 %249
    %253 = vset.pattern.permute.xlu0 0
    %254 = vperm.xlu0 %253, %v112
    %v255 = vpop.permute.xlu0 %254
    %258 = vset.pattern.permute.xlu0 0
    %259 = vperm.xlu0 %258, %v113
    %v260 = vpop.permute.xlu0 %259
    %263 = vset.pattern.permute.xlu0 0
    %264 = vperm.xlu0 %263, %v114
    %v265 = vpop.permute.xlu0 %264
    %268 = vset.pattern.permute.xlu0 0
    %269 = vperm.xlu0 %268, %v115
    %v270 = vpop.permute.xlu0 %269
    %273 = vset.pattern.permute.xlu0 0
    %274 = vperm.xlu0 %273, %v116
    %v275 = vpop.permute.xlu0 %274
    %278 = vset.pattern.permute.xlu0 0
    %279 = vperm.xlu0 %278, %v117
    %v280 = vpop.permute.xlu0 %279
    %283 = vset.pattern.permute.xlu0 0
    %284 = vperm.xlu0 %283, %v118
    %v285 = vpop.permute.xlu0 %284
    %288 = vset.pattern.permute.xlu0 0
    %289 = vperm.xlu0 %288, %v119
    %v290 = vpop.permute.xlu0 %289
    %293 = vset.pattern.permute.xlu0 0
    %294 = vperm.xlu0 %293, %v120
    %v295 = vpop.permute.xlu0 %294
    %298 = vset.pattern.permute.xlu0 0
    %299 = vperm.xlu0 %298, %v121
    %v300 = vpop.permute.xlu0 %299
    %303 = vset.pattern.permute.xlu0 0
    %304 = vperm.xlu0 %303, %v122
    %v305 = vpop.permute.xlu0 %304
    %308 = vset.pattern.permute.xlu0 0
    %309 = vperm.xlu0 %308, %v123
    %v310 = vpop.permute.xlu0 %309
    %313 = vset.pattern.permute.xlu0 0
    %314 = vperm.xlu0 %313, %v124
    %v315 = vpop.permute.xlu0 %314
    %318 = vset.pattern.permute.xlu0 0
    %319 = vperm.xlu0 %318, %v125
    %v320 = vpop.permute.xlu0 %319
    %323 = vset.pattern.permute.xlu0 0
    %324 = vperm.xlu0 %323, %v126
    %v325 = vpop.permute.xlu0 %324
    %328 = vset.pattern.permute.xlu0 0
    %329 = vperm.xlu0 %328, %v127
    %v330 = vpop.permute.xlu0 %329
    %333 = vset.pattern.permute.xlu0 0
    %334 = vperm.xlu0 %333, %v128
    %v335 = vpop.permute.xlu0 %334
    %338 = vset.pattern.permute.xlu0 0
    %339 = vperm.xlu0 %338, %v129
    %v340 = vpop.permute.xlu0 %339
    %343 = vset.pattern.permute.xlu0 0
    %344 = vperm.xlu0 %343, %v130
    %v345 = vpop.permute.xlu0 %344
    %348 = vset.pattern.permute.xlu0 0
    %349 = vperm.xlu0 %348, %v131
    %v350 = vpop.permute.xlu0 %349
    %353 = vset.pattern.permute.xlu0 0
    %354 = vperm.xlu0 %353, %v132
    %v355 = vpop.permute.xlu0 %354
    %358 = vset.pattern.permute.xlu0 0
    %359 = vperm.xlu0 %358, %v133
    %v360 = vpop.permute.xlu0 %359
    %363 = vset.pattern.permute.xlu0 0
    %364 = vperm.xlu0 %363, %v134
    %v365 = vpop.permute.xlu0 %364
    %368 = vset.pattern.permute.xlu0 0
    %369 = vperm.xlu0 %368, %v135
    %v370 = vpop.permute.xlu0 %369
    %373 = vset.pattern.permute.xlu0 0
    %374 = vperm.xlu0 %373, %v136
    %v375 = vpop.permute.xlu0 %374
    %378 = vset.pattern.permute.xlu0 0
    %379 = vperm.xlu0 %378, %v137
    %v380 = vpop.permute.xlu0 %379
    %383 = vset.pattern.permute.xlu0 0
    %384 = vperm.xlu0 %383, %v138
    %v385 = vpop.permute.xlu0 %384
    %388 = vset.pattern.permute.xlu0 0
    %389 = vperm.xlu0 %388, %v139
    %v390 = vpop.permute.xlu0 %389
    %393 = vset.pattern.permute.xlu0 0
    %394 = vperm.xlu0 %393, %v140
    %v395 = vpop.permute.xlu0 %394
    %398 = vset.pattern.permute.xlu0 0
    %399 = vperm.xlu0 %398, %v141
    %v400 = vpop.permute.xlu0 %399
    %403 = vset.pattern.permute.xlu0 0
    %404 = vperm.xlu0 %403, %v142
    %v405 = vpop.permute.xlu0 %404
    %408 = vset.pattern.permute.xlu0 0
    %409 = vperm.xlu0 %408, %v143
    %v410 = vpop.permute.xlu0 %409
    %413 = vset.pattern.permute.xlu0 0
    %414 = vperm.xlu0 %413, %v144
    %v415 = vpop.permute.xlu0 %414
    %418 = vset.pattern.permute.xlu0 0
    %419 = vperm.xlu0 %418, %v145
    %v420 = vpop.permute.xlu0 %419
    %423 = vset.pattern.permute.xlu0 0
    %424 = vperm.xlu0 %423, %v146
    %v425 = vpop.permute.xlu0 %424
    %428 = vset.pattern.permute.xlu0 0
    %429 = vperm.xlu0 %428, %v147
    %v430 = vpop.permute.xlu0 %429
    %433 = vset.pattern.permute.xlu0 0
    %434 = vperm.xlu0 %433, %v148
    %v435 = vpop.permute.xlu0 %434
    %438 = vset.pattern.permute.xlu0 0
    %439 = vperm.xlu0 %438, %v149
    %v440 = vpop.permute.xlu0 %439
    %443 = vset.pattern.permute.xlu0 0
    %444 = vperm.xlu0 %443, %v150
    %v445 = vpop.permute.xlu0 %444
    %448 = vset.pattern.permute.xlu0 0
    %449 = vperm.xlu0 %448, %v151
    %v450 = vpop.permute.xlu0 %449
    %453 = vset.pattern.permute.xlu0 0
    %454 = vperm.xlu0 %453, %v152
    %v455 = vpop.permute.xlu0 %454
    %458 = vset.pattern.permute.xlu0 0
    %459 = vperm.xlu0 %458, %v153
    %v460 = vpop.permute.xlu0 %459
    %463 = vset.pattern.permute.xlu0 0
    %464 = vperm.xlu0 %463, %v154
    %v465 = vpop.permute.xlu0 %464
    %468 = vset.pattern.permute.xlu0 0
    %469 = vperm.xlu0 %468, %v155
    %v470 = vpop.permute.xlu0 %469
    %473 = vset.pattern.permute.xlu0 0
    %474 = vperm.xlu0 %473, %v156
    %v475 = vpop.permute.xlu0 %474
    %vm477 = vcmask 261120
    %v479 = vsel %vm477, %v29, 0
    %v482 = vsel %vm477, %v30, 0
    %v485 = vsel %vm477, %v31, 0
    %v488 = vsel %vm477, %v32, 0
    %v491 = vsel %vm477, %v33, 0
    %v494 = vsel %vm477, %v34, 0
    %v497 = vsel %vm477, %v35, 0
    %v500 = vsel %vm477, %v36, 0
    %v503 = vsel %vm477, %v37, 0
    %v506 = vsel %vm477, %v38, 0
    %v509 = vsel %vm477, %v39, 0
    %v512 = vsel %vm477, %v40, 0
    %v515 = vsel %vm477, %v41, 0
    %v518 = vsel %vm477, %v42, 0
    %v521 = vsel %vm477, %v43, 0
    %v524 = vsel %vm477, %v44, 0
    %v527 = vsel %vm477, %v45, 0
    %v530 = vsel %vm477, %v46, 0
    %v533 = vsel %vm477, %v47, 0
    %v536 = vsel %vm477, %v48, 0
    %v539 = vsel %vm477, %v49, 0
    %v542 = vsel %vm477, %v50, 0
    %v545 = vsel %vm477, %v51, 0
    %v548 = vsel %vm477, %v52, 0
    %v551 = vsel %vm477, %v53, 0
    %v554 = vsel %vm477, %v54, 0
    %v557 = vsel %vm477, %v55, 0
    %v560 = vsel %vm477, %v56, 0
    %v563 = vsel %vm477, %v57, 0
    %v566 = vsel %vm477, %v58, 0
    %v569 = vsel %vm477, %v59, 0
    %v572 = vsel %vm477, %v60, 0
    %v575 = vsel %vm477, %v61, 0
    %v578 = vsel %vm477, %v62, 0
    %v581 = vsel %vm477, %v63, 0
    %v584 = vsel %vm477, %v64, 0
    %v587 = vsel %vm477, %v65, 0
    %v590 = vsel %vm477, %v66, 0
    %v593 = vsel %vm477, %v67, 0
    %v596 = vsel %vm477, %v68, 0
    %v599 = vsel %vm477, %v69, 0
    %v602 = vsel %vm477, %v70, 0
    %v605 = vsel %vm477, %v71, 0
    %v608 = vsel %vm477, %v72, 0
    %v611 = vsel %vm477, %v73, 0
    %v614 = vsel %vm477, %v74, 0
    %v617 = vsel %vm477, %v75, 0
    %v620 = vsel %vm477, %v76, 0
    %v623 = vsel %vm477, %v77, 0
    %v626 = vsel %vm477, %v78, 0
    %v629 = vsel %vm477, %v79, 0
    %v632 = vsel %vm477, %v80, 0
    %v635 = vsel %vm477, %v81, 0
    %v638 = vsel %vm477, %v82, 0
    %v641 = vsel %vm477, %v83, 0
    %v644 = vsel %vm477, %v84, 0
    %v647 = vsel %vm477, %v85, 0
    %v650 = vsel %vm477, %v86, 0
    %v653 = vsel %vm477, %v87, 0
    %v656 = vsel %vm477, %v88, 0
    %v659 = vsel %vm477, %v89, 0
    %v662 = vsel %vm477, %v90, 0
    %v665 = vsel %vm477, %v91, 0
    %v668 = vsel %vm477, %v92, 0
    %v671 = vsel %vm477, %v28, 0
    %673 = vmatprep.subr.mxu0 0.0
    %674 = vmatpush1.xpose.msra.mxu0 %v671
    %675 = vmatprep.subr.mxu0 0.0
    %676 = vmatpush1.xpose.msra.mxu0 0.0
    %677 = vmatprep.subr.mxu0 0.0
    %678 = vmatpush1.xpose.msra.mxu0 0.0
    %679 = vmatprep.subr.mxu0 0.0
    %680 = vmatpush1.xpose.msra.mxu0 0.0
    %681 = vmatprep.subr.mxu0 0.0
    %682 = vmatpush1.xpose.msra.mxu0 0.0
    %683 = vmatprep.subr.mxu0 0.0
    %684 = vmatpush1.xpose.msra.mxu0 0.0
    %685 = vmatprep.subr.mxu0 0.0
    %686 = vmatpush1.xpose.msra.mxu0 0.0
    %687 = vmatprep.subr.mxu0 0.0
    %688 = vmatpush1.xpose.msra.mxu0 0.0
    %689 = vmatprep.subr.mxu0 0.0
    %690 = vmatpush1.xpose.msra.mxu0 0.0
    %691 = vmatprep.subr.mxu0 0.0
    %692 = vmatpush1.xpose.msra.mxu0 0.0
    %693 = vmatprep.subr.mxu0 0.0
    %694 = vmatpush1.xpose.msra.mxu0 0.0
    %695 = vmatprep.subr.mxu0 0.0
    %696 = vmatpush1.xpose.msra.mxu0 0.0
    %697 = vmatprep.subr.mxu0 0.0
    %698 = vmatpush1.xpose.msra.mxu0 0.0
    %699 = vmatprep.subr.mxu0 0.0
    %700 = vmatpush1.xpose.msra.mxu0 0.0
    %701 = vmatprep.subr.mxu0 0.0
    %702 = vmatpush1.xpose.msra.mxu0 0.0
    %703 = vmatprep.subr.mxu0 0.0
    %704 = vmatpush1.xpose.msra.mxu0 0.0
    %705 = vmatprep.subr.mxu0 0.0
    %706 = vmatpush1.xpose.msra.mxu0 0.0
    %707 = vmatprep.subr.mxu0 0.0
    %708 = vmatpush1.xpose.msra.mxu0 0.0
    %709 = vmatprep.subr.mxu0 0.0
    %710 = vmatpush1.xpose.msra.mxu0 0.0
    %711 = vmatprep.subr.mxu0 0.0
    %712 = vmatpush1.xpose.msra.mxu0 0.0
    %713 = vmatprep.subr.mxu0 0.0
    %714 = vmatpush1.xpose.msra.mxu0 0.0
    %715 = vmatprep.subr.mxu0 0.0
    %716 = vmatpush1.xpose.msra.mxu0 0.0
    %717 = vmatprep.subr.mxu0 0.0
    %718 = vmatpush1.xpose.msra.mxu0 0.0
    %719 = vmatprep.subr.mxu0 0.0
    %720 = vmatpush1.xpose.msra.mxu0 0.0
    %721 = vmatprep.subr.mxu0 0.0
    %722 = vmatpush1.xpose.msra.mxu0 0.0
    %723 = vmatprep.subr.mxu0 0.0
    %724 = vmatpush1.xpose.msra.mxu0 0.0
    %725 = vmatprep.subr.mxu0 0.0
    %726 = vmatpush1.xpose.msra.mxu0 0.0
    %727 = vmatprep.subr.mxu0 0.0
    %728 = vmatpush1.xpose.msra.mxu0 0.0
    %729 = vmatprep.subr.mxu0 0.0
    %730 = vmatpush1.xpose.msra.mxu0 0.0
    %731 = vmatprep.subr.mxu0 0.0
    %732 = vmatpush1.xpose.msra.mxu0 0.0
    %733 = vmatprep.subr.mxu0 0.0
    %734 = vmatpush1.xpose.msra.mxu0 0.0
    %735 = vmatprep.subr.mxu0 0.0
    %736 = vmatpush1.xpose.msra.mxu0 0.0
    %737 = vmatprep.mubr.f32.mxu0 0.0
    %738 = vmatmul.mubr.f32.gmra.mrb[0].mxu0 %v479
    %v739 = vpop.f32.mrb[0].mxu0
    %v740 = vadd.f32 %v160, %v739
    %v741 = vpop.f32.mrb[0].mxu0
    %742 = vmatprep.mubr.f32.mxu0 0.0
    %743 = vmatmul.mubr.f32.gmra.mrb[0].mxu0 %v482
    %v744 = vpop.f32.mrb[0].mxu0
    %v745 = vadd.f32 %v165, %v744
    %v746 = vpop.f32.mrb[0].mxu0
    %747 = vmatprep.mubr.f32.mxu0 0.0
    %748 = vmatmul.mubr.f32.gmra.mrb[0].mxu0 %v485
    %v749 = vpop.f32.mrb[0].mxu0
    %v750 = vadd.f32 %v170, %v749
    %v751 = vpop.f32.mrb[0].mxu0
    %752 = vmatprep.mubr.f32.mxu0 0.0
    %753 = vmatmul.mubr.f32.gmra.mrb[0].mxu0 %v488
    %v754 = vpop.f32.mrb[0].mxu0
    %v755 = vadd.f32 %v175, %v754
    %v756 = vpop.f32.mrb[0].mxu0
    %757 = vmatprep.mubr.f32.mxu0 0.0
    %758 = vmatmul.mubr.f32.gmra.mrb[0].mxu0 %v491
    %v759 = vpop.f32.mrb[0].mxu0
    %v760 = vadd.f32 %v180, %v759
    %v761 = vpop.f32.mrb[0].mxu0
    %762 = vmatprep.mubr.f32.mxu0 0.0
    %763 = vmatmul.mubr.f32.gmra.mrb[0].mxu0 %v494
    %v764 = vpop.f32.mrb[0].mxu0
    %v765 = vadd.f32 %v185, %v764
    %v766 = vpop.f32.mrb[0].mxu0
    %767 = vmatprep.mubr.f32.mxu0 0.0
    %768 = vmatmul.mubr.f32.gmra.mrb[0].mxu0 %v497
    %v769 = vpop.f32.mrb[0].mxu0
    %v770 = vadd.f32 %v190, %v769
    %v771 = vpop.f32.mrb[0].mxu0
    %772 = vmatprep.mubr.f32.mxu0 0.0
    %773 = vmatmul.mubr.f32.gmra.mrb[0].mxu0 %v500
    %v774 = vpop.f32.mrb[0].mxu0
    %v775 = vadd.f32 %v195, %v774
    %v776 = vpop.f32.mrb[0].mxu0
    %777 = vmatprep.mubr.f32.mxu0 0.0
    %778 = vmatmul.mubr.f32.gmra.mrb[0].mxu0 %v503
    %v779 = vpop.f32.mrb[0].mxu0
    %v780 = vadd.f32 %v200, %v779
    %v781 = vpop.f32.mrb[0].mxu0
    %782 = vmatprep.mubr.f32.mxu0 0.0
    %783 = vmatmul.mubr.f32.gmra.mrb[0].mxu0 %v506
    %v784 = vpop.f32.mrb[0].mxu0
    %v785 = vadd.f32 %v205, %v784
    %v786 = vpop.f32.mrb[0].mxu0
    %787 = vmatprep.mubr.f32.mxu0 0.0
    %788 = vmatmul.mubr.f32.gmra.mrb[0].mxu0 %v509
    %v789 = vpop.f32.mrb[0].mxu0
    %v790 = vadd.f32 %v210, %v789
    %v791 = vpop.f32.mrb[0].mxu0
    %792 = vmatprep.mubr.f32.mxu0 0.0
    %793 = vmatmul.mubr.f32.gmra.mrb[0].mxu0 %v512
    %v794 = vpop.f32.mrb[0].mxu0
    %v795 = vadd.f32 %v215, %v794
    %v796 = vpop.f32.mrb[0].mxu0
    %797 = vmatprep.mubr.f32.mxu0 0.0
    %798 = vmatmul.mubr.f32.gmra.mrb[0].mxu0 %v515
    %v799 = vpop.f32.mrb[0].mxu0
    %v800 = vadd.f32 %v220, %v799
    %v801 = vpop.f32.mrb[0].mxu0
    %802 = vmatprep.mubr.f32.mxu0 0.0
    %803 = vmatmul.mubr.f32.gmra.mrb[0].mxu0 %v518
    %v804 = vpop.f32.mrb[0].mxu0
    %v805 = vadd.f32 %v225, %v804
    %v806 = vpop.f32.mrb[0].mxu0
    %807 = vmatprep.mubr.f32.mxu0 0.0
    %808 = vmatmul.mubr.f32.gmra.mrb[0].mxu0 %v521
    %v809 = vpop.f32.mrb[0].mxu0
    %v810 = vadd.f32 %v230, %v809
    %v811 = vpop.f32.mrb[0].mxu0
    %812 = vmatprep.mubr.f32.mxu0 0.0
    %813 = vmatmul.mubr.f32.gmra.mrb[0].mxu0 %v524
    %v814 = vpop.f32.mrb[0].mxu0
    %v815 = vadd.f32 %v235, %v814
    %v816 = vpop.f32.mrb[0].mxu0
    %817 = vmatprep.mubr.f32.mxu0 0.0
    %818 = vmatmul.mubr.f32.gmra.mrb[0].mxu0 %v527
    %v819 = vpop.f32.mrb[0].mxu0
    %v820 = vadd.f32 %v240, %v819
    %v821 = vpop.f32.mrb[0].mxu0
    %822 = vmatprep.mubr.f32.mxu0 0.0
    %823 = vmatmul.mubr.f32.gmra.mrb[0].mxu0 %v530
    %v824 = vpop.f32.mrb[0].mxu0
    %v825 = vadd.f32 %v245, %v824
    %v826 = vpop.f32.mrb[0].mxu0
    %827 = vmatprep.mubr.f32.mxu0 0.0
    %828 = vmatmul.mubr.f32.gmra.mrb[0].mxu0 %v533
    %v829 = vpop.f32.mrb[0].mxu0
    %v830 = vadd.f32 %v250, %v829
    %v831 = vpop.f32.mrb[0].mxu0
    %832 = vmatprep.mubr.f32.mxu0 0.0
    %833 = vmatmul.mubr.f32.gmra.mrb[0].mxu0 %v536
    %v834 = vpop.f32.mrb[0].mxu0
    %v835 = vadd.f32 %v255, %v834
    %v836 = vpop.f32.mrb[0].mxu0
    %837 = vmatprep.mubr.f32.mxu0 0.0
    %838 = vmatmul.mubr.f32.gmra.mrb[0].mxu0 %v539
    %v839 = vpop.f32.mrb[0].mxu0
    %v840 = vadd.f32 %v260, %v839
    %v841 = vpop.f32.mrb[0].mxu0
    %842 = vmatprep.mubr.f32.mxu0 0.0
    %843 = vmatmul.mubr.f32.gmra.mrb[0].mxu0 %v542
    %v844 = vpop.f32.mrb[0].mxu0
    %v845 = vadd.f32 %v265, %v844
    %v846 = vpop.f32.mrb[0].mxu0
    %847 = vmatprep.mubr.f32.mxu0 0.0
    %848 = vmatmul.mubr.f32.gmra.mrb[0].mxu0 %v545
    %v849 = vpop.f32.mrb[0].mxu0
    %v850 = vadd.f32 %v270, %v849
    %v851 = vpop.f32.mrb[0].mxu0
    %852 = vmatprep.mubr.f32.mxu0 0.0
    %853 = vmatmul.mubr.f32.gmra.mrb[0].mxu0 %v548
    %v854 = vpop.f32.mrb[0].mxu0
    %v855 = vadd.f32 %v275, %v854
    %v856 = vpop.f32.mrb[0].mxu0
    %857 = vmatprep.mubr.f32.mxu0 0.0
    %858 = vmatmul.mubr.f32.gmra.mrb[0].mxu0 %v551
    %v859 = vpop.f32.mrb[0].mxu0
    %v860 = vadd.f32 %v280, %v859
    %v861 = vpop.f32.mrb[0].mxu0
    %862 = vmatprep.mubr.f32.mxu0 0.0
    %863 = vmatmul.mubr.f32.gmra.mrb[0].mxu0 %v554
    %v864 = vpop.f32.mrb[0].mxu0
    %v865 = vadd.f32 %v285, %v864
    %v866 = vpop.f32.mrb[0].mxu0
    %867 = vmatprep.mubr.f32.mxu0 0.0
    %868 = vmatmul.mubr.f32.gmra.mrb[0].mxu0 %v557
    %v869 = vpop.f32.mrb[0].mxu0
    %v870 = vadd.f32 %v290, %v869
    %v871 = vpop.f32.mrb[0].mxu0
    %872 = vmatprep.mubr.f32.mxu0 0.0
    %873 = vmatmul.mubr.f32.gmra.mrb[0].mxu0 %v560
    %v874 = vpop.f32.mrb[0].mxu0
    %v875 = vadd.f32 %v295, %v874
    %v876 = vpop.f32.mrb[0].mxu0
    %877 = vmatprep.mubr.f32.mxu0 0.0
    %878 = vmatmul.mubr.f32.gmra.mrb[0].mxu0 %v563
    %v879 = vpop.f32.mrb[0].mxu0
    %v880 = vadd.f32 %v300, %v879
    %v881 = vpop.f32.mrb[0].mxu0
    %882 = vmatprep.mubr.f32.mxu0 0.0
    %883 = vmatmul.mubr.f32.gmra.mrb[0].mxu0 %v566
    %v884 = vpop.f32.mrb[0].mxu0
    %v885 = vadd.f32 %v305, %v884
    %v886 = vpop.f32.mrb[0].mxu0
    %887 = vmatprep.mubr.f32.mxu0 0.0
    %888 = vmatmul.mubr.f32.gmra.mrb[0].mxu0 %v569
    %v889 = vpop.f32.mrb[0].mxu0
    %v890 = vadd.f32 %v310, %v889
    %v891 = vpop.f32.mrb[0].mxu0
    %892 = vmatprep.mubr.f32.mxu0 0.0
    %893 = vmatmul.mubr.f32.gmra.mrb[0].mxu0 %v572
    %v894 = vpop.f32.mrb[0].mxu0
    %v895 = vadd.f32 %v315, %v894
    %v896 = vpop.f32.mrb[0].mxu0
    %897 = vmatprep.mubr.f32.mxu0 0.0
    %898 = vmatmul.mubr.f32.gmra.mrb[0].mxu0 %v575
    %v899 = vpop.f32.mrb[0].mxu0
    %v900 = vadd.f32 %v320, %v899
    %v901 = vpop.f32.mrb[0].mxu0
    %902 = vmatprep.mubr.f32.mxu0 0.0
    %903 = vmatmul.mubr.f32.gmra.mrb[0].mxu0 %v578
    %v904 = vpop.f32.mrb[0].mxu0
    %v905 = vadd.f32 %v325, %v904
    %v906 = vpop.f32.mrb[0].mxu0
    %907 = vmatprep.mubr.f32.mxu0 0.0
    %908 = vmatmul.mubr.f32.gmra.mrb[0].mxu0 %v581
    %v909 = vpop.f32.mrb[0].mxu0
    %v910 = vadd.f32 %v330, %v909
    %v911 = vpop.f32.mrb[0].mxu0
    %912 = vmatprep.mubr.f32.mxu0 0.0
    %913 = vmatmul.mubr.f32.gmra.mrb[0].mxu0 %v584
    %v914 = vpop.f32.mrb[0].mxu0
    %v915 = vadd.f32 %v335, %v914
    %v916 = vpop.f32.mrb[0].mxu0
    %917 = vmatprep.mubr.f32.mxu0 0.0
    %918 = vmatmul.mubr.f32.gmra.mrb[0].mxu0 %v587
    %v919 = vpop.f32.mrb[0].mxu0
    %v920 = vadd.f32 %v340, %v919
    %v921 = vpop.f32.mrb[0].mxu0
    %922 = vmatprep.mubr.f32.mxu0 0.0
    %923 = vmatmul.mubr.f32.gmra.mrb[0].mxu0 %v590
    %v924 = vpop.f32.mrb[0].mxu0
    %v925 = vadd.f32 %v345, %v924
    %v926 = vpop.f32.mrb[0].mxu0
    %927 = vmatprep.mubr.f32.mxu0 0.0
    %928 = vmatmul.mubr.f32.gmra.mrb[0].mxu0 %v593
    %v929 = vpop.f32.mrb[0].mxu0
    %v930 = vadd.f32 %v350, %v929
    %v931 = vpop.f32.mrb[0].mxu0
    %932 = vmatprep.mubr.f32.mxu0 0.0
    %933 = vmatmul.mubr.f32.gmra.mrb[0].mxu0 %v596
    %v934 = vpop.f32.mrb[0].mxu0
    %v935 = vadd.f32 %v355, %v934
    %v936 = vpop.f32.mrb[0].mxu0
    %937 = vmatprep.mubr.f32.mxu0 0.0
    %938 = vmatmul.mubr.f32.gmra.mrb[0].mxu0 %v599
    %v939 = vpop.f32.mrb[0].mxu0
    %v940 = vadd.f32 %v360, %v939
    %v941 = vpop.f32.mrb[0].mxu0
    %942 = vmatprep.mubr.f32.mxu0 0.0
    %943 = vmatmul.mubr.f32.gmra.mrb[0].mxu0 %v602
    %v944 = vpop.f32.mrb[0].mxu0
    %v945 = vadd.f32 %v365, %v944
    %v946 = vpop.f32.mrb[0].mxu0
    %947 = vmatprep.mubr.f32.mxu0 0.0
    %948 = vmatmul.mubr.f32.gmra.mrb[0].mxu0 %v605
    %v949 = vpop.f32.mrb[0].mxu0
    %v950 = vadd.f32 %v370, %v949
    %v951 = vpop.f32.mrb[0].mxu0
    %952 = vmatprep.mubr.f32.mxu0 0.0
    %953 = vmatmul.mubr.f32.gmra.mrb[0].mxu0 %v608
    %v954 = vpop.f32.mrb[0].mxu0
    %v955 = vadd.f32 %v375, %v954
    %v956 = vpop.f32.mrb[0].mxu0
    %957 = vmatprep.mubr.f32.mxu0 0.0
    %958 = vmatmul.mubr.f32.gmra.mrb[0].mxu0 %v611
    %v959 = vpop.f32.mrb[0].mxu0
    %v960 = vadd.f32 %v380, %v959
    %v961 = vpop.f32.mrb[0].mxu0
    %962 = vmatprep.mubr.f32.mxu0 0.0
    %963 = vmatmul.mubr.f32.gmra.mrb[0].mxu0 %v614
    %v964 = vpop.f32.mrb[0].mxu0
    %v965 = vadd.f32 %v385, %v964
    %v966 = vpop.f32.mrb[0].mxu0
    %967 = vmatprep.mubr.f32.mxu0 0.0
    %968 = vmatmul.mubr.f32.gmra.mrb[0].mxu0 %v617
    %v969 = vpop.f32.mrb[0].mxu0
    %v970 = vadd.f32 %v390, %v969
    %v971 = vpop.f32.mrb[0].mxu0
    %972 = vmatprep.mubr.f32.mxu0 0.0
    %973 = vmatmul.mubr.f32.gmra.mrb[0].mxu0 %v620
    %v974 = vpop.f32.mrb[0].mxu0
    %v975 = vadd.f32 %v395, %v974
    %v976 = vpop.f32.mrb[0].mxu0
    %977 = vmatprep.mubr.f32.mxu0 0.0
    %978 = vmatmul.mubr.f32.gmra.mrb[0].mxu0 %v623
    %v979 = vpop.f32.mrb[0].mxu0
    %v980 = vadd.f32 %v400, %v979
    %v981 = vpop.f32.mrb[0].mxu0
    %982 = vmatprep.mubr.f32.mxu0 0.0
    %983 = vmatmul.mubr.f32.gmra.mrb[0].mxu0 %v626
    %v984 = vpop.f32.mrb[0].mxu0
    %v985 = vadd.f32 %v405, %v984
    %v986 = vpop.f32.mrb[0].mxu0
    %987 = vmatprep.mubr.f32.mxu0 0.0
    %988 = vmatmul.mubr.f32.gmra.mrb[0].mxu0 %v629
    %v989 = vpop.f32.mrb[0].mxu0
    %v990 = vadd.f32 %v410, %v989
    %v991 = vpop.f32.mrb[0].mxu0
    %992 = vmatprep.mubr.f32.mxu0 0.0
    %993 = vmatmul.mubr.f32.gmra.mrb[0].mxu0 %v632
    %v994 = vpop.f32.mrb[0].mxu0
    %v995 = vadd.f32 %v415, %v994
    %v996 = vpop.f32.mrb[0].mxu0
    %997 = vmatprep.mubr.f32.mxu0 0.0
    %998 = vmatmul.mubr.f32.gmra.mrb[0].mxu0 %v635
    %v999 = vpop.f32.mrb[0].mxu0
    %v1000 = vadd.f32 %v420, %v999
    %v1001 = vpop.f32.mrb[0].mxu0
    %1002 = vmatprep.mubr.f32.mxu0 0.0
    %1003 = vmatmul.mubr.f32.gmra.mrb[0].mxu0 %v638
    %v1004 = vpop.f32.mrb[0].mxu0
    %v1005 = vadd.f32 %v425, %v1004
    %v1006 = vpop.f32.mrb[0].mxu0
    %1007 = vmatprep.mubr.f32.mxu0 0.0
    %1008 = vmatmul.mubr.f32.gmra.mrb[0].mxu0 %v641
    %v1009 = vpop.f32.mrb[0].mxu0
    %v1010 = vadd.f32 %v430, %v1009
    %v1011 = vpop.f32.mrb[0].mxu0
    %1012 = vmatprep.mubr.f32.mxu0 0.0
    %1013 = vmatmul.mubr.f32.gmra.mrb[0].mxu0 %v644
    %v1014 = vpop.f32.mrb[0].mxu0
    %v1015 = vadd.f32 %v435, %v1014
    %v1016 = vpop.f32.mrb[0].mxu0
    %1017 = vmatprep.mubr.f32.mxu0 0.0
    %1018 = vmatmul.mubr.f32.gmra.mrb[0].mxu0 %v647
    %v1019 = vpop.f32.mrb[0].mxu0
    %v1020 = vadd.f32 %v440, %v1019
    %v1021 = vpop.f32.mrb[0].mxu0
    %1022 = vmatprep.mubr.f32.mxu0 0.0
    %1023 = vmatmul.mubr.f32.gmra.mrb[0].mxu0 %v650
    %v1024 = vpop.f32.mrb[0].mxu0
    %v1025 = vadd.f32 %v445, %v1024
    %v1026 = vpop.f32.mrb[0].mxu0
    %1027 = vmatprep.mubr.f32.mxu0 0.0
    %1028 = vmatmul.mubr.f32.gmra.mrb[0].mxu0 %v653
    %v1029 = vpop.f32.mrb[0].mxu0
    %v1030 = vadd.f32 %v450, %v1029
    %v1031 = vpop.f32.mrb[0].mxu0
    %1032 = vmatprep.mubr.f32.mxu0 0.0
    %1033 = vmatmul.mubr.f32.gmra.mrb[0].mxu0 %v656
    %v1034 = vpop.f32.mrb[0].mxu0
    %v1035 = vadd.f32 %v455, %v1034
    %v1036 = vpop.f32.mrb[0].mxu0
    %1037 = vmatprep.mubr.f32.mxu0 0.0
    %1038 = vmatmul.mubr.f32.gmra.mrb[0].mxu0 %v659
    %v1039 = vpop.f32.mrb[0].mxu0
    %v1040 = vadd.f32 %v460, %v1039
    %v1041 = vpop.f32.mrb[0].mxu0
    %1042 = vmatprep.mubr.f32.mxu0 0.0
    %1043 = vmatmul.mubr.f32.gmra.mrb[0].mxu0 %v662
    %v1044 = vpop.f32.mrb[0].mxu0
    %v1045 = vadd.f32 %v465, %v1044
    %v1046 = vpop.f32.mrb[0].mxu0
    %1047 = vmatprep.mubr.f32.mxu0 0.0
    %1048 = vmatmul.mubr.f32.gmra.mrb[0].mxu0 %v665
    %v1049 = vpop.f32.mrb[0].mxu0
    %v1050 = vadd.f32 %v470, %v1049
    %v1051 = vpop.f32.mrb[0].mxu0
    %1052 = vmatprep.mubr.f32.mxu0 0.0
    %1053 = vmatmul.mubr.f32.gmra.mrb[0].mxu0 %v668
    %v1054 = vpop.f32.mrb[0].mxu0
    %v1055 = vadd.f32 %v475, %v1054
    %v1056 = vpop.f32.mrb[0].mxu0
    %1057 = vdwg.mxu0
    %v1058 = vmax.f32 %v740, 0.0
    %v1059 = vmax.f32 %v745, 0.0
    %v1060 = vmax.f32 %v750, 0.0
    %v1061 = vmax.f32 %v755, 0.0
    %v1062 = vmax.f32 %v760, 0.0
    %v1063 = vmax.f32 %v765, 0.0
    %v1064 = vmax.f32 %v770, 0.0
    %v1065 = vmax.f32 %v775, 0.0
    %v1066 = vmax.f32 %v780, 0.0
    %v1067 = vmax.f32 %v785, 0.0
    %v1068 = vmax.f32 %v790, 0.0
    %v1069 = vmax.f32 %v795, 0.0
    %v1070 = vmax.f32 %v800, 0.0
    %v1071 = vmax.f32 %v805, 0.0
    %v1072 = vmax.f32 %v810, 0.0
    %v1073 = vmax.f32 %v815, 0.0
    %v1074 = vmax.f32 %v820, 0.0
    %v1075 = vmax.f32 %v825, 0.0
    %v1076 = vmax.f32 %v830, 0.0
    %v1077 = vmax.f32 %v835, 0.0
    %v1078 = vmax.f32 %v840, 0.0
    %v1079 = vmax.f32 %v845, 0.0
    %v1080 = vmax.f32 %v850, 0.0
    %v1081 = vmax.f32 %v855, 0.0
    %v1082 = vmax.f32 %v860, 0.0
    %v1083 = vmax.f32 %v865, 0.0
    %v1084 = vmax.f32 %v870, 0.0
    %v1085 = vmax.f32 %v875, 0.0
    %v1086 = vmax.f32 %v880, 0.0
    %v1087 = vmax.f32 %v885, 0.0
    %v1088 = vmax.f32 %v890, 0.0
    %v1089 = vmax.f32 %v895, 0.0
    %v1090 = vmax.f32 %v900, 0.0
    %v1091 = vmax.f32 %v905, 0.0
    %v1092 = vmax.f32 %v910, 0.0
    %v1093 = vmax.f32 %v915, 0.0
    %v1094 = vmax.f32 %v920, 0.0
    %v1095 = vmax.f32 %v925, 0.0
    %v1096 = vmax.f32 %v930, 0.0
    %v1097 = vmax.f32 %v935, 0.0
    %v1098 = vmax.f32 %v940, 0.0
    %v1099 = vmax.f32 %v945, 0.0
    %v1100 = vmax.f32 %v950, 0.0
    %v1101 = vmax.f32 %v955, 0.0
    %v1102 = vmax.f32 %v960, 0.0
    %v1103 = vmax.f32 %v965, 0.0
    %v1104 = vmax.f32 %v970, 0.0
    %v1105 = vmax.f32 %v975, 0.0
    %v1106 = vmax.f32 %v980, 0.0
    %v1107 = vmax.f32 %v985, 0.0
    %v1108 = vmax.f32 %v990, 0.0
    %v1109 = vmax.f32 %v995, 0.0
    %v1110 = vmax.f32 %v1000, 0.0
    %v1111 = vmax.f32 %v1005, 0.0
    %v1112 = vmax.f32 %v1010, 0.0
    %v1113 = vmax.f32 %v1015, 0.0
    %v1114 = vmax.f32 %v1020, 0.0
    %v1115 = vmax.f32 %v1025, 0.0
    %v1116 = vmax.f32 %v1030, 0.0
    %v1117 = vmax.f32 %v1035, 0.0
    %v1118 = vmax.f32 %v1040, 0.0
    %v1119 = vmax.f32 %v1045, 0.0
    %v1120 = vmax.f32 %v1050, 0.0
    %v1121 = vmax.f32 %v1055, 0.0
    %v1122 = vld [vmem:[%s3] sm:$0xff]
    %v1123 = vld [vmem:[%s3 + $0x8] sm:$0xff]
    %v1124 = vld [vmem:[%s3 + $0x10] sm:$0xff]
    %v1125 = vld [vmem:[%s3 + $0x18] sm:$0xff]
    %v1126 = vld [vmem:[%s3 + $0x20] sm:$0xff]
    %v1127 = vld [vmem:[%s3 + $0x28] sm:$0xff]
    %v1128 = vld [vmem:[%s3 + $0x30] sm:$0xff]
    %v1129 = vld [vmem:[%s3 + $0x38] sm:$0xff]
    %v1130 = vld [vmem:[%s3 + $0x40] sm:$0xff]
    %v1131 = vld [vmem:[%s3 + $0x48] sm:$0xff]
    %v1132 = vld [vmem:[%s3 + $0x50] sm:$0xff]
    %v1133 = vld [vmem:[%s3 + $0x58] sm:$0xff]
    %v1134 = vld [vmem:[%s3 + $0x60] sm:$0xff]
    %v1135 = vld [vmem:[%s3 + $0x68] sm:$0xff]
    %v1136 = vld [vmem:[%s3 + $0x70] sm:$0xff]
    %v1137 = vld [vmem:[%s3 + $0x78] sm:$0xff]
    %v1138 = vld [vmem:[%s3 + $0x80] sm:$0xff]
    %v1139 = vld [vmem:[%s3 + $0x88] sm:$0xff]
    %v1140 = vld [vmem:[%s3 + $0x90] sm:$0xff]
    %v1141 = vld [vmem:[%s3 + $0x98] sm:$0xff]
    %v1142 = vld [vmem:[%s3 + $0xa0] sm:$0xff]
    %v1143 = vld [vmem:[%s3 + $0xa8] sm:$0xff]
    %v1144 = vld [vmem:[%s3 + $0xb0] sm:$0xff]
    %v1145 = vld [vmem:[%s3 + $0xb8] sm:$0xff]
    %v1146 = vld [vmem:[%s3 + $0xc0] sm:$0xff]
    %v1147 = vld [vmem:[%s3 + $0xc8] sm:$0xff]
    %v1148 = vld [vmem:[%s3 + $0xd0] sm:$0xff]
    %v1149 = vld [vmem:[%s3 + $0xd8] sm:$0xff]
    %v1150 = vld [vmem:[%s3 + $0xe0] sm:$0xff]
    %v1151 = vld [vmem:[%s3 + $0xe8] sm:$0xff]
    %v1152 = vld [vmem:[%s3 + $0xf0] sm:$0xff]
    %v1153 = vld [vmem:[%s3 + $0xf8] sm:$0xff]
    %v1154 = vld [vmem:[%s3 + $0x100] sm:$0xff]
    %v1155 = vld [vmem:[%s3 + $0x108] sm:$0xff]
    %v1156 = vld [vmem:[%s3 + $0x110] sm:$0xff]
    %v1157 = vld [vmem:[%s3 + $0x118] sm:$0xff]
    %v1158 = vld [vmem:[%s3 + $0x120] sm:$0xff]
    %v1159 = vld [vmem:[%s3 + $0x128] sm:$0xff]
    %v1160 = vld [vmem:[%s3 + $0x130] sm:$0xff]
    %v1161 = vld [vmem:[%s3 + $0x138] sm:$0xff]
    %v1162 = vld [vmem:[%s3 + $0x140] sm:$0xff]
    %v1163 = vld [vmem:[%s3 + $0x148] sm:$0xff]
    %v1164 = vld [vmem:[%s3 + $0x150] sm:$0xff]
    %v1165 = vld [vmem:[%s3 + $0x158] sm:$0xff]
    %v1166 = vld [vmem:[%s3 + $0x160] sm:$0xff]
    %v1167 = vld [vmem:[%s3 + $0x168] sm:$0xff]
    %v1168 = vld [vmem:[%s3 + $0x170] sm:$0xff]
    %v1169 = vld [vmem:[%s3 + $0x178] sm:$0xff]
    %v1170 = vld [vmem:[%s3 + $0x180] sm:$0xff]
    %v1171 = vld [vmem:[%s3 + $0x188] sm:$0xff]
    %v1172 = vld [vmem:[%s3 + $0x190] sm:$0xff]
    %v1173 = vld [vmem:[%s3 + $0x198] sm:$0xff]
    %v1174 = vld [vmem:[%s3 + $0x1a0] sm:$0xff]
    %v1175 = vld [vmem:[%s3 + $0x1a8] sm:$0xff]
    %v1176 = vld [vmem:[%s3 + $0x1b0] sm:$0xff]
    %v1177 = vld [vmem:[%s3 + $0x1b8] sm:$0xff]
    %v1178 = vld [vmem:[%s3 + $0x1c0] sm:$0xff]
    %v1179 = vld [vmem:[%s3 + $0x1c8] sm:$0xff]
    %v1180 = vld [vmem:[%s3 + $0x1d0] sm:$0xff]
    %v1181 = vld [vmem:[%s3 + $0x1d8] sm:$0xff]
    %v1182 = vld [vmem:[%s3 + $0x1e0] sm:$0xff]
    %v1183 = vld [vmem:[%s3 + $0x1e8] sm:$0xff]
    %v1184 = vld [vmem:[%s3 + $0x1f0] sm:$0xff]
    %v1185 = vld [vmem:[%s3 + $0x1f8] sm:$0xff]
    %v1186 = vld [vmem:[%s4] sm:$0xff]
    %v1187 = vld [vmem:[%s4 + $0x8] sm:$0xff]
    %v1188 = vld [vmem:[%s4 + $0x10] sm:$0xff]
    %v1189 = vld [vmem:[%s4 + $0x18] sm:$0xff]
    %v1190 = vld [vmem:[%s4 + $0x20] sm:$0xff]
    %v1191 = vld [vmem:[%s4 + $0x28] sm:$0xff]
    %v1192 = vld [vmem:[%s4 + $0x30] sm:$0xff]
    %v1193 = vld [vmem:[%s4 + $0x38] sm:$0xff]
    %v1194 = vld [vmem:[%s4 + $0x40] sm:$0xff]
    %v1195 = vld [vmem:[%s4 + $0x48] sm:$0xff]
    %v1196 = vld [vmem:[%s4 + $0x50] sm:$0xff]
    %v1197 = vld [vmem:[%s4 + $0x58] sm:$0xff]
    %v1198 = vld [vmem:[%s4 + $0x60] sm:$0xff]
    %v1199 = vld [vmem:[%s4 + $0x68] sm:$0xff]
    %v1200 = vld [vmem:[%s4 + $0x70] sm:$0xff]
    %v1201 = vld [vmem:[%s4 + $0x78] sm:$0xff]
    %1203 = vset.pattern.permute.xlu0 0
    %1204 = vperm.xlu0 %1203, %v1186
    %v1205 = vpop.permute.xlu0 %1204
    %1208 = vset.pattern.permute.xlu0 0
    %1209 = vperm.xlu0 %1208, %v1187
    %v1210 = vpop.permute.xlu0 %1209
    %1213 = vset.pattern.permute.xlu0 0
    %1214 = vperm.xlu0 %1213, %v1188
    %v1215 = vpop.permute.xlu0 %1214
    %1218 = vset.pattern.permute.xlu0 0
    %1219 = vperm.xlu0 %1218, %v1189
    %v1220 = vpop.permute.xlu0 %1219
    %1223 = vset.pattern.permute.xlu0 0
    %1224 = vperm.xlu0 %1223, %v1190
    %v1225 = vpop.permute.xlu0 %1224
    %1228 = vset.pattern.permute.xlu0 0
    %1229 = vperm.xlu0 %1228, %v1191
    %v1230 = vpop.permute.xlu0 %1229
    %1233 = vset.pattern.permute.xlu0 0
    %1234 = vperm.xlu0 %1233, %v1192
    %v1235 = vpop.permute.xlu0 %1234
    %1238 = vset.pattern.permute.xlu0 0
    %1239 = vperm.xlu0 %1238, %v1193
    %v1240 = vpop.permute.xlu0 %1239
    %1243 = vset.pattern.permute.xlu0 0
    %1244 = vperm.xlu0 %1243, %v1194
    %v1245 = vpop.permute.xlu0 %1244
    %1248 = vset.pattern.permute.xlu0 0
    %1249 = vperm.xlu0 %1248, %v1195
    %v1250 = vpop.permute.xlu0 %1249
    %1253 = vset.pattern.permute.xlu0 0
    %1254 = vperm.xlu0 %1253, %v1196
    %v1255 = vpop.permute.xlu0 %1254
    %1258 = vset.pattern.permute.xlu0 0
    %1259 = vperm.xlu0 %1258, %v1197
    %v1260 = vpop.permute.xlu0 %1259
    %1263 = vset.pattern.permute.xlu0 0
    %1264 = vperm.xlu0 %1263, %v1198
    %v1265 = vpop.permute.xlu0 %1264
    %1268 = vset.pattern.permute.xlu0 0
    %1269 = vperm.xlu0 %1268, %v1199
    %v1270 = vpop.permute.xlu0 %1269
    %1273 = vset.pattern.permute.xlu0 0
    %1274 = vperm.xlu0 %1273, %v1200
    %v1275 = vpop.permute.xlu0 %1274
    %1278 = vset.pattern.permute.xlu0 0
    %1279 = vperm.xlu0 %1278, %v1201
    %v1280 = vpop.permute.xlu0 %1279
    %1282 = vmatprep.subr.mxu0 0.0
    %1283 = vmatpush1.msra.mxu0 %v1058
    %1284 = vmatprep.subr.mxu0 0.0
    %1285 = vmatpush1.msra.mxu0 %v1059
    %1286 = vmatprep.subr.mxu0 0.0
    %1287 = vmatpush1.msra.mxu0 %v1060
    %1288 = vmatprep.subr.mxu0 0.0
    %1289 = vmatpush1.msra.mxu0 %v1061
    %1290 = vmatprep.subr.mxu0 0.0
    %1291 = vmatpush1.msra.mxu0 %v1062
    %1292 = vmatprep.subr.mxu0 0.0
    %1293 = vmatpush1.msra.mxu0 %v1063
    %1294 = vmatprep.subr.mxu0 0.0
    %1295 = vmatpush1.msra.mxu0 %v1064
    %1296 = vmatprep.subr.mxu0 0.0
    %1297 = vmatpush1.msra.mxu0 %v1065
    %1298 = vmatprep.subr.mxu0 0.0
    %1299 = vmatpush1.msra.mxu0 %v1066
    %1300 = vmatprep.subr.mxu0 0.0
    %1301 = vmatpush1.msra.mxu0 %v1067
    %1302 = vmatprep.subr.mxu0 0.0
    %1303 = vmatpush1.msra.mxu0 %v1068
    %1304 = vmatprep.subr.mxu0 0.0
    %1305 = vmatpush1.msra.mxu0 %v1069
    %1306 = vmatprep.subr.mxu0 0.0
    %1307 = vmatpush1.msra.mxu0 %v1070
    %1308 = vmatprep.subr.mxu0 0.0
    %1309 = vmatpush1.msra.mxu0 %v1071
    %1310 = vmatprep.subr.mxu0 0.0
    %1311 = vmatpush1.msra.mxu0 %v1072
    %1312 = vmatprep.subr.mxu0 0.0
    %1313 = vmatpush1.msra.mxu0 %v1073
    %1314 = vmatprep.subr.mxu0 0.0
    %1315 = vmatpush1.msra.mxu0 %v1074
    %1316 = vmatprep.subr.mxu0 0.0
    %1317 = vmatpush1.msra.mxu0 %v1075
    %1318 = vmatprep.subr.mxu0 0.0
    %1319 = vmatpush1.msra.mxu0 %v1076
    %1320 = vmatprep.subr.mxu0 0.0
    %1321 = vmatpush1.msra.mxu0 %v1077
    %1322 = vmatprep.subr.mxu0 0.0
    %1323 = vmatpush1.msra.mxu0 %v1078
    %1324 = vmatprep.subr.mxu0 0.0
    %1325 = vmatpush1.msra.mxu0 %v1079
    %1326 = vmatprep.subr.mxu0 0.0
    %1327 = vmatpush1.msra.mxu0 %v1080
    %1328 = vmatprep.subr.mxu0 0.0
    %1329 = vmatpush1.msra.mxu0 %v1081
    %1330 = vmatprep.subr.mxu0 0.0
    %1331 = vmatpush1.msra.mxu0 %v1082
    %1332 = vmatprep.subr.mxu0 0.0
    %1333 = vmatpush1.msra.mxu0 %v1083
    %1334 = vmatprep.subr.mxu0 0.0
    %1335 = vmatpush1.msra.mxu0 %v1084
    %1336 = vmatprep.subr.mxu0 0.0
    %1337 = vmatpush1.msra.mxu0 %v1085
    %1338 = vmatprep.subr.mxu0 0.0
    %1339 = vmatpush1.msra.mxu0 %v1086
    %1340 = vmatprep.subr.mxu0 0.0
    %1341 = vmatpush1.msra.mxu0 %v1087
    %1342 = vmatprep.subr.mxu0 0.0
    %1343 = vmatpush1.msra.mxu0 %v1088
    %1344 = vmatprep.subr.mxu0 0.0
    %1345 = vmatpush1.msra.mxu0 %v1089
    %1346 = vmatprep.mubr.f32.mxu0 %v1123
    %1347 = vmatmul.mubr.f32.gmra.mrb[0].mxu0 %v1122
    %v1348 = vpop.f32.mrb[0].mxu0
    %v1349 = vadd.f32 %v1205, %v1348
    %v1350 = vpop.f32.mrb[0].mxu0
    %1351 = vmatprep.mubr.f32.mxu0 %v1127
    %1352 = vmatmul.mubr.f32.gmra.mrb[0].mxu0 %v1126
    %v1353 = vpop.f32.mrb[0].mxu0
    %v1354 = vadd.f32 %v1210, %v1353
    %v1355 = vpop.f32.mrb[0].mxu0
    %1356 = vmatprep.mubr.f32.mxu0 %v1131
    %1357 = vmatmul.mubr.f32.gmra.mrb[0].mxu0 %v1130
    %v1358 = vpop.f32.mrb[0].mxu0
    %v1359 = vadd.f32 %v1215, %v1358
    %v1360 = vpop.f32.mrb[0].mxu0
    %1361 = vmatprep.mubr.f32.mxu0 %v1135
    %1362 = vmatmul.mubr.f32.gmra.mrb[0].mxu0 %v1134
    %v1363 = vpop.f32.mrb[0].mxu0
    %v1364 = vadd.f32 %v1220, %v1363
    %v1365 = vpop.f32.mrb[0].mxu0
    %1366 = vmatprep.mubr.f32.mxu0 %v1139
    %1367 = vmatmul.mubr.f32.gmra.mrb[0].mxu0 %v1138
    %v1368 = vpop.f32.mrb[0].mxu0
    %v1369 = vadd.f32 %v1225, %v1368
    %v1370 = vpop.f32.mrb[0].mxu0
    %1371 = vmatprep.mubr.f32.mxu0 %v1143
    %1372 = vmatmul.mubr.f32.gmra.mrb[0].mxu0 %v1142
    %v1373 = vpop.f32.mrb[0].mxu0
    %v1374 = vadd.f32 %v1230, %v1373
    %v1375 = vpop.f32.mrb[0].mxu0
    %1376 = vmatprep.mubr.f32.mxu0 %v1147
    %1377 = vmatmul.mubr.f32.gmra.mrb[0].mxu0 %v1146
    %v1378 = vpop.f32.mrb[0].mxu0
    %v1379 = vadd.f32 %v1235, %v1378
    %v1380 = vpop.f32.mrb[0].mxu0
    %1381 = vmatprep.mubr.f32.mxu0 %v1151
    %1382 = vmatmul.mubr.f32.gmra.mrb[0].mxu0 %v1150
    %v1383 = vpop.f32.mrb[0].mxu0
    %v1384 = vadd.f32 %v1240, %v1383
    %v1385 = vpop.f32.mrb[0].mxu0
    %1386 = vmatprep.mubr.f32.mxu0 %v1155
    %1387 = vmatmul.mubr.f32.gmra.mrb[0].mxu0 %v1154
    %v1388 = vpop.f32.mrb[0].mxu0
    %v1389 = vadd.f32 %v1245, %v1388
    %v1390 = vpop.f32.mrb[0].mxu0
    %1391 = vmatprep.mubr.f32.mxu0 %v1159
    %1392 = vmatmul.mubr.f32.gmra.mrb[0].mxu0 %v1158
    %v1393 = vpop.f32.mrb[0].mxu0
    %v1394 = vadd.f32 %v1250, %v1393
    %v1395 = vpop.f32.mrb[0].mxu0
    %1396 = vmatprep.mubr.f32.mxu0 %v1163
    %1397 = vmatmul.mubr.f32.gmra.mrb[0].mxu0 %v1162
    %v1398 = vpop.f32.mrb[0].mxu0
    %v1399 = vadd.f32 %v1255, %v1398
    %v1400 = vpop.f32.mrb[0].mxu0
    %1401 = vmatprep.mubr.f32.mxu0 %v1167
    %1402 = vmatmul.mubr.f32.gmra.mrb[0].mxu0 %v1166
    %v1403 = vpop.f32.mrb[0].mxu0
    %v1404 = vadd.f32 %v1260, %v1403
    %v1405 = vpop.f32.mrb[0].mxu0
    %1406 = vmatprep.mubr.f32.mxu0 %v1171
    %1407 = vmatmul.mubr.f32.gmra.mrb[0].mxu0 %v1170
    %v1408 = vpop.f32.mrb[0].mxu0
    %v1409 = vadd.f32 %v1265, %v1408
    %v1410 = vpop.f32.mrb[0].mxu0
    %1411 = vmatprep.mubr.f32.mxu0 %v1175
    %1412 = vmatmul.mubr.f32.gmra.mrb[0].mxu0 %v1174
    %v1413 = vpop.f32.mrb[0].mxu0
    %v1414 = vadd.f32 %v1270, %v1413
    %v1415 = vpop.f32.mrb[0].mxu0
    %1416 = vmatprep.mubr.f32.mxu0 %v1179
    %1417 = vmatmul.mubr.f32.gmra.mrb[0].mxu0 %v1178
    %v1418 = vpop.f32.mrb[0].mxu0
    %v1419 = vadd.f32 %v1275, %v1418
    %v1420 = vpop.f32.mrb[0].mxu0
    %1421 = vmatprep.mubr.f32.mxu0 %v1183
    %1422 = vmatmul.mubr.f32.gmra.mrb[0].mxu0 %v1182
    %v1423 = vpop.f32.mrb[0].mxu0
    %v1424 = vadd.f32 %v1280, %v1423
    %v1425 = vpop.f32.mrb[0].mxu0
    %1426 = vdwg.mxu0
    %1427 = vmatprep.subr.mxu0 0.0
    %1428 = vmatpush1.msra.mxu0 %v1090
    %1429 = vmatprep.subr.mxu0 0.0
    %1430 = vmatpush1.msra.mxu0 %v1091
    %1431 = vmatprep.subr.mxu0 0.0
    %1432 = vmatpush1.msra.mxu0 %v1092
    %1433 = vmatprep.subr.mxu0 0.0
    %1434 = vmatpush1.msra.mxu0 %v1093
    %1435 = vmatprep.subr.mxu0 0.0
    %1436 = vmatpush1.msra.mxu0 %v1094
    %1437 = vmatprep.subr.mxu0 0.0
    %1438 = vmatpush1.msra.mxu0 %v1095
    %1439 = vmatprep.subr.mxu0 0.0
    %1440 = vmatpush1.msra.mxu0 %v1096
    %1441 = vmatprep.subr.mxu0 0.0
    %1442 = vmatpush1.msra.mxu0 %v1097
    %1443 = vmatprep.subr.mxu0 0.0
    %1444 = vmatpush1.msra.mxu0 %v1098
    %1445 = vmatprep.subr.mxu0 0.0
    %1446 = vmatpush1.msra.mxu0 %v1099
    %1447 = vmatprep.subr.mxu0 0.0
    %1448 = vmatpush1.msra.mxu0 %v1100
    %1449 = vmatprep.subr.mxu0 0.0
    %1450 = vmatpush1.msra.mxu0 %v1101
    %1451 = vmatprep.subr.mxu0 0.0
    %1452 = vmatpush1.msra.mxu0 %v1102
    %1453 = vmatprep.subr.mxu0 0.0
    %1454 = vmatpush1.msra.mxu0 %v1103
    %1455 = vmatprep.subr.mxu0 0.0
    %1456 = vmatpush1.msra.mxu0 %v1104
    %1457 = vmatprep.subr.mxu0 0.0
    %1458 = vmatpush1.msra.mxu0 %v1105
    %1459 = vmatprep.subr.mxu0 0.0
    %1460 = vmatpush1.msra.mxu0 %v1106
    %1461 = vmatprep.subr.mxu0 0.0
    %1462 = vmatpush1.msra.mxu0 %v1107
    %1463 = vmatprep.subr.mxu0 0.0
    %1464 = vmatpush1.msra.mxu0 %v1108
    %1465 = vmatprep.subr.mxu0 0.0
    %1466 = vmatpush1.msra.mxu0 %v1109
    %1467 = vmatprep.subr.mxu0 0.0
    %1468 = vmatpush1.msra.mxu0 %v1110
    %1469 = vmatprep.subr.mxu0 0.0
    %1470 = vmatpush1.msra.mxu0 %v1111
    %1471 = vmatprep.subr.mxu0 0.0
    %1472 = vmatpush1.msra.mxu0 %v1112
    %1473 = vmatprep.subr.mxu0 0.0
    %1474 = vmatpush1.msra.mxu0 %v1113
    %1475 = vmatprep.subr.mxu0 0.0
    %1476 = vmatpush1.msra.mxu0 %v1114
    %1477 = vmatprep.subr.mxu0 0.0
    %1478 = vmatpush1.msra.mxu0 %v1115
    %1479 = vmatprep.subr.mxu0 0.0
    %1480 = vmatpush1.msra.mxu0 %v1116
    %1481 = vmatprep.subr.mxu0 0.0
    %1482 = vmatpush1.msra.mxu0 %v1117
    %1483 = vmatprep.subr.mxu0 0.0
    %1484 = vmatpush1.msra.mxu0 %v1118
    %1485 = vmatprep.subr.mxu0 0.0
    %1486 = vmatpush1.msra.mxu0 %v1119
    %1487 = vmatprep.subr.mxu0 0.0
    %1488 = vmatpush1.msra.mxu0 %v1120
    %1489 = vmatprep.subr.mxu0 0.0
    %1490 = vmatpush1.msra.mxu0 %v1121
    %1491 = vmatprep.mubr.f32.mxu0 %v1125
    %1492 = vmatmul.mubr.f32.gmra.mrb[0].mxu0 %v1124
    %v1493 = vpop.f32.mrb[0].mxu0
    %v1494 = vadd.f32 %v1349, %v1493
    %v1495 = vpop.f32.mrb[0].mxu0
    %1496 = vmatprep.mubr.f32.mxu0 %v1129
    %1497 = vmatmul.mubr.f32.gmra.mrb[0].mxu0 %v1128
    %v1498 = vpop.f32.mrb[0].mxu0
    %v1499 = vadd.f32 %v1354, %v1498
    %v1500 = vpop.f32.mrb[0].mxu0
    %1501 = vmatprep.mubr.f32.mxu0 %v1133
    %1502 = vmatmul.mubr.f32.gmra.mrb[0].mxu0 %v1132
    %v1503 = vpop.f32.mrb[0].mxu0
    %v1504 = vadd.f32 %v1359, %v1503
    %v1505 = vpop.f32.mrb[0].mxu0
    %1506 = vmatprep.mubr.f32.mxu0 %v1137
    %1507 = vmatmul.mubr.f32.gmra.mrb[0].mxu0 %v1136
    %v1508 = vpop.f32.mrb[0].mxu0
    %v1509 = vadd.f32 %v1364, %v1508
    %v1510 = vpop.f32.mrb[0].mxu0
    %1511 = vmatprep.mubr.f32.mxu0 %v1141
    %1512 = vmatmul.mubr.f32.gmra.mrb[0].mxu0 %v1140
    %v1513 = vpop.f32.mrb[0].mxu0
    %v1514 = vadd.f32 %v1369, %v1513
    %v1515 = vpop.f32.mrb[0].mxu0
    %1516 = vmatprep.mubr.f32.mxu0 %v1145
    %1517 = vmatmul.mubr.f32.gmra.mrb[0].mxu0 %v1144
    %v1518 = vpop.f32.mrb[0].mxu0
    %v1519 = vadd.f32 %v1374, %v1518
    %v1520 = vpop.f32.mrb[0].mxu0
    %1521 = vmatprep.mubr.f32.mxu0 %v1149
    %1522 = vmatmul.mubr.f32.gmra.mrb[0].mxu0 %v1148
    %v1523 = vpop.f32.mrb[0].mxu0
    %v1524 = vadd.f32 %v1379, %v1523
    %v1525 = vpop.f32.mrb[0].mxu0
    %1526 = vmatprep.mubr.f32.mxu0 %v1153
    %1527 = vmatmul.mubr.f32.gmra.mrb[0].mxu0 %v1152
    %v1528 = vpop.f32.mrb[0].mxu0
    %v1529 = vadd.f32 %v1384, %v1528
    %v1530 = vpop.f32.mrb[0].mxu0
    %1531 = vmatprep.mubr.f32.mxu0 %v1157
    %1532 = vmatmul.mubr.f32.gmra.mrb[0].mxu0 %v1156
    %v1533 = vpop.f32.mrb[0].mxu0
    %v1534 = vadd.f32 %v1389, %v1533
    %v1535 = vpop.f32.mrb[0].mxu0
    %1536 = vmatprep.mubr.f32.mxu0 %v1161
    %1537 = vmatmul.mubr.f32.gmra.mrb[0].mxu0 %v1160
    %v1538 = vpop.f32.mrb[0].mxu0
    %v1539 = vadd.f32 %v1394, %v1538
    %v1540 = vpop.f32.mrb[0].mxu0
    %1541 = vmatprep.mubr.f32.mxu0 %v1165
    %1542 = vmatmul.mubr.f32.gmra.mrb[0].mxu0 %v1164
    %v1543 = vpop.f32.mrb[0].mxu0
    %v1544 = vadd.f32 %v1399, %v1543
    %v1545 = vpop.f32.mrb[0].mxu0
    %1546 = vmatprep.mubr.f32.mxu0 %v1169
    %1547 = vmatmul.mubr.f32.gmra.mrb[0].mxu0 %v1168
    %v1548 = vpop.f32.mrb[0].mxu0
    %v1549 = vadd.f32 %v1404, %v1548
    %v1550 = vpop.f32.mrb[0].mxu0
    %1551 = vmatprep.mubr.f32.mxu0 %v1173
    %1552 = vmatmul.mubr.f32.gmra.mrb[0].mxu0 %v1172
    %v1553 = vpop.f32.mrb[0].mxu0
    %v1554 = vadd.f32 %v1409, %v1553
    %v1555 = vpop.f32.mrb[0].mxu0
    %1556 = vmatprep.mubr.f32.mxu0 %v1177
    %1557 = vmatmul.mubr.f32.gmra.mrb[0].mxu0 %v1176
    %v1558 = vpop.f32.mrb[0].mxu0
    %v1559 = vadd.f32 %v1414, %v1558
    %v1560 = vpop.f32.mrb[0].mxu0
    %1561 = vmatprep.mubr.f32.mxu0 %v1181
    %1562 = vmatmul.mubr.f32.gmra.mrb[0].mxu0 %v1180
    %v1563 = vpop.f32.mrb[0].mxu0
    %v1564 = vadd.f32 %v1419, %v1563
    %v1565 = vpop.f32.mrb[0].mxu0
    %1566 = vmatprep.mubr.f32.mxu0 %v1185
    %1567 = vmatmul.mubr.f32.gmra.mrb[0].mxu0 %v1184
    %v1568 = vpop.f32.mrb[0].mxu0
    %v1569 = vadd.f32 %v1424, %v1568
    %v1570 = vpop.f32.mrb[0].mxu0
    %1571 = vdwg.mxu0
    %v1572 = vmax.f32 %v1494, 0.0
    %v1573 = vmax.f32 %v1499, 0.0
    %v1574 = vmax.f32 %v1504, 0.0
    %v1575 = vmax.f32 %v1509, 0.0
    %v1576 = vmax.f32 %v1514, 0.0
    %v1577 = vmax.f32 %v1519, 0.0
    %v1578 = vmax.f32 %v1524, 0.0
    %v1579 = vmax.f32 %v1529, 0.0
    %v1580 = vmax.f32 %v1534, 0.0
    %v1581 = vmax.f32 %v1539, 0.0
    %v1582 = vmax.f32 %v1544, 0.0
    %v1583 = vmax.f32 %v1549, 0.0
    %v1584 = vmax.f32 %v1554, 0.0
    %v1585 = vmax.f32 %v1559, 0.0
    %v1586 = vmax.f32 %v1564, 0.0
    %v1587 = vmax.f32 %v1569, 0.0
    %v1588 = vld [vmem:[%s5] sm:$0xff]
    %v1589 = vld [vmem:[%s5 + $0x8] sm:$0xff]
    %v1590 = vld [vmem:[%s5 + $0x10] sm:$0xff]
    %v1591 = vld [vmem:[%s5 + $0x18] sm:$0xff]
    %v1592 = vld [vmem:[%s5 + $0x20] sm:$0xff]
    %v1593 = vld [vmem:[%s5 + $0x28] sm:$0xff]
    %v1594 = vld [vmem:[%s5 + $0x30] sm:$0xff]
    %v1595 = vld [vmem:[%s5 + $0x38] sm:$0xff]
    %v1596 = vld [vmem:[%s5 + $0x40] sm:$0xff]
    %v1597 = vld [vmem:[%s5 + $0x48] sm:$0xff]
    %v1598 = vld [vmem:[%s5 + $0x50] sm:$0xff]
    %v1599 = vld [vmem:[%s5 + $0x58] sm:$0xff]
    %v1600 = vld [vmem:[%s5 + $0x60] sm:$0xff]
    %v1601 = vld [vmem:[%s5 + $0x68] sm:$0xff]
    %v1602 = vld [vmem:[%s5 + $0x70] sm:$0xff]
    %v1603 = vld [vmem:[%s5 + $0x78] sm:$0xff]
    %1605 = vset.pattern.permute.xlu0 0
    %1606 = vperm.xlu0 %1605, %v1588
    %v1607 = vpop.permute.xlu0 %1606
    %1610 = vset.pattern.permute.xlu0 0
    %1611 = vperm.xlu0 %1610, %v1589
    %v1612 = vpop.permute.xlu0 %1611
    %1615 = vset.pattern.permute.xlu0 0
    %1616 = vperm.xlu0 %1615, %v1590
    %v1617 = vpop.permute.xlu0 %1616
    %1620 = vset.pattern.permute.xlu0 0
    %1621 = vperm.xlu0 %1620, %v1591
    %v1622 = vpop.permute.xlu0 %1621
    %1625 = vset.pattern.permute.xlu0 0
    %1626 = vperm.xlu0 %1625, %v1592
    %v1627 = vpop.permute.xlu0 %1626
    %1630 = vset.pattern.permute.xlu0 0
    %1631 = vperm.xlu0 %1630, %v1593
    %v1632 = vpop.permute.xlu0 %1631
    %1635 = vset.pattern.permute.xlu0 0
    %1636 = vperm.xlu0 %1635, %v1594
    %v1637 = vpop.permute.xlu0 %1636
    %1640 = vset.pattern.permute.xlu0 0
    %1641 = vperm.xlu0 %1640, %v1595
    %v1642 = vpop.permute.xlu0 %1641
    %1645 = vset.pattern.permute.xlu0 0
    %1646 = vperm.xlu0 %1645, %v1596
    %v1647 = vpop.permute.xlu0 %1646
    %1650 = vset.pattern.permute.xlu0 0
    %1651 = vperm.xlu0 %1650, %v1597
    %v1652 = vpop.permute.xlu0 %1651
    %1655 = vset.pattern.permute.xlu0 0
    %1656 = vperm.xlu0 %1655, %v1598
    %v1657 = vpop.permute.xlu0 %1656
    %1660 = vset.pattern.permute.xlu0 0
    %1661 = vperm.xlu0 %1660, %v1599
    %v1662 = vpop.permute.xlu0 %1661
    %1665 = vset.pattern.permute.xlu0 0
    %1666 = vperm.xlu0 %1665, %v1600
    %v1667 = vpop.permute.xlu0 %1666
    %1670 = vset.pattern.permute.xlu0 0
    %1671 = vperm.xlu0 %1670, %v1601
    %v1672 = vpop.permute.xlu0 %1671
    %1675 = vset.pattern.permute.xlu0 0
    %1676 = vperm.xlu0 %1675, %v1602
    %v1677 = vpop.permute.xlu0 %1676
    %1680 = vset.pattern.permute.xlu0 0
    %1681 = vperm.xlu0 %1680, %v1603
    %v1682 = vpop.permute.xlu0 %1681
    %v1684 = vmul.f32 %v1572, %v1607
    %v1685 = vmul.f32 %v1573, %v1612
    %v1686 = vmul.f32 %v1574, %v1617
    %v1687 = vmul.f32 %v1575, %v1622
    %v1688 = vmul.f32 %v1576, %v1627
    %v1689 = vmul.f32 %v1577, %v1632
    %v1690 = vmul.f32 %v1578, %v1637
    %v1691 = vmul.f32 %v1579, %v1642
    %v1692 = vmul.f32 %v1580, %v1647
    %v1693 = vmul.f32 %v1581, %v1652
    %v1694 = vmul.f32 %v1582, %v1657
    %v1695 = vmul.f32 %v1583, %v1662
    %v1696 = vmul.f32 %v1584, %v1667
    %v1697 = vmul.f32 %v1585, %v1672
    %v1698 = vmul.f32 %v1586, %v1677
    %v1699 = vmul.f32 %v1587, %v1682
    %vm1700 = vcmask 64512
    %v1701 = vsel %vm1700, %v1684, 0.0
    %v1702 = vsel %vm1700, %v1685, 0.0
    %v1703 = vadd.f32 %v1701, %v1702
    %v1704 = vsel %vm1700, %v1686, 0.0
    %v1705 = vadd.f32 %v1703, %v1704
    %v1706 = vsel %vm1700, %v1687, 0.0
    %v1707 = vadd.f32 %v1705, %v1706
    %v1708 = vsel %vm1700, %v1688, 0.0
    %v1709 = vadd.f32 %v1707, %v1708
    %v1710 = vsel %vm1700, %v1689, 0.0
    %v1711 = vadd.f32 %v1709, %v1710
    %v1712 = vsel %vm1700, %v1690, 0.0
    %v1713 = vadd.f32 %v1711, %v1712
    %v1714 = vsel %vm1700, %v1691, 0.0
    %v1715 = vadd.f32 %v1713, %v1714
    %v1716 = vsel %vm1700, %v1692, 0.0
    %v1717 = vadd.f32 %v1715, %v1716
    %v1718 = vsel %vm1700, %v1693, 0.0
    %v1719 = vadd.f32 %v1717, %v1718
    %v1720 = vsel %vm1700, %v1694, 0.0
    %v1721 = vadd.f32 %v1719, %v1720
    %v1722 = vsel %vm1700, %v1695, 0.0
    %v1723 = vadd.f32 %v1721, %v1722
    %v1724 = vsel %vm1700, %v1696, 0.0
    %v1725 = vadd.f32 %v1723, %v1724
    %v1726 = vsel %vm1700, %v1697, 0.0
    %v1727 = vadd.f32 %v1725, %v1726
    %v1728 = vsel %vm1700, %v1698, 0.0
    %v1729 = vadd.f32 %v1727, %v1728
    %v1730 = vsel %vm1700, %v1699, 0.0
    %v1731 = vadd.f32 %v1729, %v1730
    %v1732 = vrot.slane %v1731, 4
    %v1733 = vadd.f32 %v1731, %v1732
    %v1734 = vrot.slane %v1733, 2
    %v1735 = vadd.f32 %v1733, %v1734
    %v1736 = vrot.slane %v1735, 1
    %v1737 = vadd.f32 %v1735, %v1736
    %s1738 = sld [smem:[#allocation2]]
    %v1739 = vstv %s1738
    %v1740 = vadd.f32 %v1737, %v1739
    %vm1741 = vcmask 57344
    %1742 = vst.msk [vmem:[#allocation3] sm:$0x1] %vm1741, %v1740
    // Predicated region
    $region30: #{regression_head.1} parent=1 // pred_check
      _
    $region31: #{regression_head.1} parent=1 // pred_check_branch
      %1744 = sbr.rel (0) target = $region33
    $region32: #{regression_head.1} parent=1 // pred_region
      %s1746 = ssub.s32 16, 16
      %1747 = vsyncadd [#allocation4], %s1746
      %s1749 = sshll.u32 [#allocation3], 4
      %s1750 = int_to_ptr.vmem [resolvable:$true] %s1749
      %1752 = dma.vmem_to_hbm [thread:$0]  %s1750, 16, %s7, [#allocation4]
    $region33: #{regression_head.1} parent=1 // pred_fallthru
      _
    // Predicated region
    $region34: #{regression_head.1} parent=1 // pred_check
      _
    $region35: #{regression_head.1} parent=1 // pred_check_branch
      %1754 = sbr.rel (0) target = $region37
    $region36: #{regression_head.1} parent=1 // pred_region
      %1755 = dma.done [#allocation4], 16
    $region37: #{regression_head.1} parent=1 // pred_fallthru
      _
    %1756 = vsyncpa [#allocation4], 1

</llo_original>
